<compile_context>
chip_gen: v5e
topology: v5e:2x2
jax: 0.10.0
libtpu: 0.0.40
codegen_flags: <defaults>
</compile_context>

<pallas_src>
import functools

import jax
import jax.numpy as jnp
from jax.experimental import pallas as pl
from jax.experimental.pallas import tpu as pltpu


def _shsa_kernel(x_ref, wqkv_ref, bqkv_ref, wproj_ref, bproj_ref, o_ref, *,
                 qk_dim, pdim, gn_eps):
    """Bt images per grid step, channels-on-sublanes layout.

    x_ref    : (Bt, dim, N)           input, spatial on the lane axis
    wqkv_ref : (2*qk_dim+pdim, pdim)  bf16, BN + GN-affine + attn-scale folded
    bqkv_ref : (2*qk_dim+pdim, 1)     f32 fused bias
    wproj_ref: (dim, dim)             bf16, BN folded
    bproj_ref: (dim, 1)               f32 fused bias
    o_ref    : (Bt, dim, N)
    """
    bt, _, n_pix = x_ref.shape

    # Hoist weight loads out of the per-image loop (no CSE across iterations).
    wqkv = wqkv_ref[...]                                 # bf16 (out_qkv, pdim)
    bqkv = bqkv_ref[...]                                 # f32  (out_qkv, 1)
    wproj = wproj_ref[...]                               # bf16 (dim, dim)
    bproj = bproj_ref[...]                               # f32  (dim, 1)
    inv_cnt = 1.0 / float(pdim * n_pix)

    def one_image(b, carry):
        x = x_ref[b].astype(jnp.float32)                 # (dim, N)
        x1 = x[:pdim, :]                                 # (pdim, N)
        x2 = x[pdim:, :]                                 # (dim-pdim, N)

        # --- GroupNorm(num_groups=1): single-pass stats over (pdim, N) -------
        mean = jnp.sum(x1) * inv_cnt
        ex2 = jnp.sum(x1 * x1) * inv_cnt
        var = ex2 - mean * mean
        x1n = (x1 - mean) * jax.lax.rsqrt(var + gn_eps)  # affine folded into W

        # --- qkv: fused 1x1 conv + BN (+ GN affine, + attn scale on q rows) ---
        qkv = jax.lax.dot_general(
            wqkv, x1n.astype(jnp.bfloat16),
            (((1,), (0,)), ((), ())),
            preferred_element_type=jnp.float32) + bqkv   # (out_qkv, N)

        q = qkv[:qk_dim, :]                              # (qk_dim, N), pre-scaled
        k = qkv[qk_dim:2 * qk_dim, :]                    # (qk_dim, N)
        v = qkv[2 * qk_dim:, :]                          # (pdim, N)

        # --- single-head attention over the flattened spatial axis -----------
        # logits[n, m] = sum_d q[d, n] * k[d, m]
        logits = jax.lax.dot_general(
            q.astype(jnp.bfloat16), k.astype(jnp.bfloat16),
            (((0,), (0,)), ((), ())),
            preferred_element_type=jnp.float32)          # (N, N)
        logits = logits - jnp.max(logits, axis=-1, keepdims=True)
        p = jnp.exp(logits)
        inv_den = pl.reciprocal(jnp.sum(p, axis=-1, keepdims=True), approx=True)
        attn = (p * inv_den).astype(jnp.bfloat16)        # (N, N)

        # x1o[c, n] = sum_m v[c, m] * attn[n, m]
        x1o = jax.lax.dot_general(
            v.astype(jnp.bfloat16), attn,
            (((1,), (1,)), ((), ())),
            preferred_element_type=jnp.float32)          # (pdim, N)

        # --- proj: ReLU + fused 1x1 conv + BN; sublane concat, one K=dim dot --
        y = jnp.concatenate(
            [jnp.maximum(x1o, 0.0), jnp.maximum(x2, 0.0)], axis=0)  # (dim, N)
        out = jax.lax.dot_general(
            wproj, y.astype(jnp.bfloat16),
            (((1,), (0,)), ((), ())),
            preferred_element_type=jnp.float32) + bproj  # (dim, N)

        o_ref[b] = out.astype(o_ref.dtype)
        return carry

    jax.lax.fori_loop(0, bt, one_image, None, unroll=True)


def shsa_forward(x_nchw, gn_w, gn_b, w_qkv, qkv_bn, w_proj, proj_bn, *,
                 qk_dim, pdim, gn_eps=1e-5):
    """x_nchw: (B, dim, H, W).  w_qkv: (2*qk_dim+pdim, pdim, 1, 1) torch layout.
    qkv_bn / proj_bn: (gamma, beta, running_mean, running_var, eps)."""
    B, dim, H, W = x_nchw.shape
    N = H * W
    out_qkv = 2 * qk_dim + pdim
    scale = float(qk_dim) ** -0.5

    # NCHW -> (B, dim, N): channels on sublanes, flattened spatial on lanes.
    # (pure reshape, no transpose / HBM relayout)
    x = x_nchw.reshape(B, dim, N)

    # --- fold BN (inference), GroupNorm affine, and attention scale into the
    # --- 1x1 qkv conv weight + bias (all exact, done once in f32) -------------
    g, b, rm, rv, eps = qkv_bn
    s = g / jnp.sqrt(rv + eps)
    w_bn = w_qkv[:, :, 0, 0] * s[:, None]                # (out_qkv, pdim)
    b_bn = b - rm * s                                    # (out_qkv,)
    # qkv = W_bn @ (x_hat * gnw + gnb) + b_bn
    w_qkv_f = w_bn * gn_w[None, :]
    b_qkv_f = b_bn + w_bn @ gn_b
    # fold attn scale into the q rows
    w_qkv_f = w_qkv_f.at[:qk_dim].multiply(scale)
    b_qkv_f = b_qkv_f.at[:qk_dim].multiply(scale)
    w_qkv_f = w_qkv_f.astype(jnp.bfloat16)
    b_qkv_f = b_qkv_f.reshape(out_qkv, 1).astype(jnp.float32)

    # --- fold BN into the 1x1 proj conv weight + bias -------------------------
    g2, b2, rm2, rv2, eps2 = proj_bn
    s2 = g2 / jnp.sqrt(rv2 + eps2)
    w_proj_f = (w_proj[:, :, 0, 0] * s2[:, None]).astype(jnp.bfloat16)  # (dim, dim)
    b_proj_f = (b2 - rm2 * s2).reshape(dim, 1).astype(jnp.float32)

    # Batch tile: largest divisor of B up to 8 (amortize per-grid-step overhead).
    bt = 1
    for cand in range(1, min(B, 8) + 1):
        if B % cand == 0:
            bt = cand

    kernel = functools.partial(_shsa_kernel, qk_dim=qk_dim, pdim=pdim,
                               gn_eps=gn_eps)

    out = pl.pallas_call(
        kernel,
        out_shape=jax.ShapeDtypeStruct((B, dim, N), x.dtype),
        grid_spec=pltpu.PrefetchScalarGridSpec(
            num_scalar_prefetch=0,
            grid=(B // bt,),
            in_specs=[
                pl.BlockSpec((bt, dim, N), lambda i: (i, 0, 0)),
                pl.BlockSpec((out_qkv, pdim), lambda i: (0, 0)),
                pl.BlockSpec((out_qkv, 1), lambda i: (0, 0)),
                pl.BlockSpec((dim, dim), lambda i: (0, 0)),
                pl.BlockSpec((dim, 1), lambda i: (0, 0)),
            ],
            out_specs=pl.BlockSpec((bt, dim, N), lambda i: (i, 0, 0)),
        ),
        compiler_params=pltpu.CompilerParams(
            dimension_semantics=("parallel",),
        ),
    )(x, w_qkv_f, b_qkv_f, w_proj_f, b_proj_f)

    # (B, dim, N) -> NCHW (pure reshape)
    return out.reshape(B, dim, H, W)


def _reference(x, gn_w, gn_b, w_qkv, qkv_bn, w_proj, proj_bn, qk_dim, pdim):
    """Plain-JAX reference of SHSA.forward (NCHW, inference BN)."""
    B, C, H, W = x.shape
    N = H * W
    x1, x2 = x[:, :pdim], x[:, pdim:]

    mean = jnp.mean(x1, axis=(1, 2, 3), keepdims=True)
    var = jnp.mean((x1 - mean) ** 2, axis=(1, 2, 3), keepdims=True)
    x1 = (x1 - mean) / jnp.sqrt(var + 1e-5)
    x1 = x1 * gn_w[None, :, None, None] + gn_b[None, :, None, None]

    g, b, rm, rv, eps = qkv_bn
    s = g / jnp.sqrt(rv + eps)
    qkv = jnp.einsum('oc,bchw->bohw', w_qkv[:, :, 0, 0], x1, precision='highest')
    qkv = qkv * s[None, :, None, None] + (b - rm * s)[None, :, None, None]

    q, k, v = qkv[:, :qk_dim], qkv[:, qk_dim:2 * qk_dim], qkv[:, 2 * qk_dim:]
    q = q.reshape(B, qk_dim, N)
    k = k.reshape(B, qk_dim, N)
    v = v.reshape(B, pdim, N)

    attn = jnp.einsum('bdn,bdm->bnm', q, k, precision='highest') * (qk_dim ** -0.5)
    attn = jax.nn.softmax(attn, axis=-1)
    x1o = jnp.einsum('bcm,bnm->bcn', v, attn, precision='highest').reshape(B, pdim, H, W)

    y = jax.nn.relu(jnp.concatenate([x1o, x2], axis=1))
    g2, b2, rm2, rv2, eps2 = proj_bn
    s2 = g2 / jnp.sqrt(rv2 + eps2)
    out = jnp.einsum('oc,bchw->bohw', w_proj[:, :, 0, 0], y, precision='highest')
    out = out * s2[None, :, None, None] + (b2 - rm2 * s2)[None, :, None, None]
    return out


if __name__ == "__main__":
    B, dim, H, W = 2, 64, 16, 16
    qk_dim, pdim = 16, 32
    out_qkv = 2 * qk_dim + pdim

    keys = jax.random.split(jax.random.PRNGKey(0), 12)

    x = jax.random.normal(keys[0], (B, dim, H, W), dtype=jnp.float32)

    # GroupNorm(1, pdim) affine params
    gn_w = 1.0 + 0.1 * jax.random.normal(keys[1], (pdim,), dtype=jnp.float32)
    gn_b = 0.1 * jax.random.normal(keys[2], (pdim,), dtype=jnp.float32)

    # qkv: Conv2d(pdim, 2*qk_dim+pdim, 1, bias=False) + BatchNorm2d
    w_qkv = 0.1 * jax.random.normal(keys[3], (out_qkv, pdim, 1, 1), dtype=jnp.float32)
    qkv_bn = (jnp.ones((out_qkv,), jnp.float32),
              jnp.zeros((out_qkv,), jnp.float32),
              0.1 * jax.random.normal(keys[4], (out_qkv,), dtype=jnp.float32),
              jax.random.uniform(keys[5], (out_qkv,), minval=0.5, maxval=1.5),
              1e-5)

    # proj: ReLU -> Conv2d(dim, dim, 1, bias=False) + BatchNorm2d
    # (bn_weight_init=0 would zero the output; use non-trivial gamma for a check)
    w_proj = 0.1 * jax.random.normal(keys[6], (dim, dim, 1, 1), dtype=jnp.float32)
    proj_bn = (jax.random.uniform(keys[7], (dim,), minval=0.5, maxval=1.5),
               0.1 * jax.random.normal(keys[8], (dim,), dtype=jnp.float32),
               0.1 * jax.random.normal(keys[9], (dim,), dtype=jnp.float32),
               jax.random.uniform(keys[10], (dim,), minval=0.5, maxval=1.5),
               1e-5)

    out = shsa_forward(x, gn_w, gn_b, w_qkv, qkv_bn, w_proj, proj_bn,
                       qk_dim=qk_dim, pdim=pdim)
    out = jax.block_until_ready(out)

    ref = _reference(x, gn_w, gn_b, w_qkv, qkv_bn, w_proj, proj_bn, qk_dim, pdim)
    assert out.shape == (B, dim, H, W)
    # bf16 MXU operands + approx reciprocal -> slightly relaxed tolerance.
    max_err = float(jnp.max(jnp.abs(out - ref)))
    assert jnp.allclose(out, ref, atol=2e-2, rtol=2e-2), max_err

    print("KERNEL_OK")
</pallas_src>

<mosaic_0001>
module attributes {stable_mosaic.version = 11 : i64} {
  func.func @_shsa_kernel(%arg0: i32, %arg1: memref<2x64x256xf32, #tpu.memory_space<vmem>>, %arg2: memref<64x32xbf16, #tpu.memory_space<vmem>>, %arg3: memref<64x1xf32, #tpu.memory_space<vmem>>, %arg4: memref<64x64xbf16, #tpu.memory_space<vmem>>, %arg5: memref<64x1xf32, #tpu.memory_space<vmem>>, %arg6: memref<2x64x256xf32, #tpu.memory_space<vmem>>) attributes {dimension_semantics = [#tpu.dimension_semantics<parallel>], iteration_bounds = array<i64: 1>, scalar_prefetch = 0 : i64, scratch_operands = 0 : i64, tpu.core_type = #tpu.core_type<tc>, window_params = [{transform_indices = @transform_0, window_bounds = array<i64: 2, 64, 256>}, {pipeline_mode = #tpu.pipeline_mode<synchronous>, transform_indices = @transform_1, window_bounds = array<i64: 64, 32>}, {pipeline_mode = #tpu.pipeline_mode<synchronous>, transform_indices = @transform_2, window_bounds = array<i64: 64, 1>}, {pipeline_mode = #tpu.pipeline_mode<synchronous>, transform_indices = @transform_3, window_bounds = array<i64: 64, 64>}, {pipeline_mode = #tpu.pipeline_mode<synchronous>, transform_indices = @transform_4, window_bounds = array<i64: 64, 1>}, {transform_indices = @transform_5, window_bounds = array<i64: 2, 64, 256>}]} {
    %c0 = arith.constant 0 : index
    %c0_0 = arith.constant 0 : index
    %0 = vector.load %arg2[%c0, %c0_0] : memref<64x32xbf16, #tpu.memory_space<vmem>>, vector<64x32xbf16>
    %c0_1 = arith.constant 0 : index
    %c0_2 = arith.constant 0 : index
    %1 = vector.load %arg3[%c0_1, %c0_2] : memref<64x1xf32, #tpu.memory_space<vmem>>, vector<64x1xf32>
    %c0_3 = arith.constant 0 : index
    %c0_4 = arith.constant 0 : index
    %2 = vector.load %arg4[%c0_3, %c0_4] : memref<64x64xbf16, #tpu.memory_space<vmem>>, vector<64x64xbf16>
    %c0_5 = arith.constant 0 : index
    %c0_6 = arith.constant 0 : index
    %3 = vector.load %arg5[%c0_5, %c0_6] : memref<64x1xf32, #tpu.memory_space<vmem>>, vector<64x1xf32>
    %c0_i32 = arith.constant 0 : i32
    %4 = arith.index_cast %c0_i32 : i32 to index
    %c0_7 = arith.constant 0 : index
    %c0_8 = arith.constant 0 : index
    %5 = vector.load %arg1[%4, %c0_7, %c0_8] : memref<2x64x256xf32, #tpu.memory_space<vmem>>, vector<1x64x256xf32>
    %6 = vector.shape_cast %5 : vector<1x64x256xf32> to vector<64x256xf32>
    %7 = vector.extract_strided_slice %6 {offsets = [0, 0], sizes = [32, 256], strides = [1, 1]} : vector<64x256xf32> to vector<32x256xf32>
    %8 = vector.extract_strided_slice %6 {offsets = [32, 0], sizes = [32, 256], strides = [1, 1]} : vector<64x256xf32> to vector<32x256xf32>
    %9 = vector.shape_cast %7 : vector<32x256xf32> to vector<1x32x256xf32>
    %cst = arith.constant dense<0.000000e+00> : vector<1xf32>
    %10 = vector.multi_reduction <add>, %9, %cst [1, 2] : vector<1x32x256xf32> to vector<1xf32>
    %11 = vector.shape_cast %10 : vector<1xf32> to vector<1x1x1xf32>
    %12 = vector.extract %11[0, 0, 0] : f32 from vector<1x1x1xf32>
    %cst_9 = arith.constant 1.22070313E-4 : f32
    %13 = arith.mulf %12, %cst_9 : f32
    %14 = arith.mulf %7, %7 : vector<32x256xf32>
    %15 = vector.shape_cast %14 : vector<32x256xf32> to vector<1x32x256xf32>
    %cst_10 = arith.constant dense<0.000000e+00> : vector<1xf32>
    %16 = vector.multi_reduction <add>, %15, %cst_10 [1, 2] : vector<1x32x256xf32> to vector<1xf32>
    %17 = vector.shape_cast %16 : vector<1xf32> to vector<1x1x1xf32>
    %18 = vector.extract %17[0, 0, 0] : f32 from vector<1x1x1xf32>
    %cst_11 = arith.constant 1.22070313E-4 : f32
    %19 = arith.mulf %18, %cst_11 : f32
    %20 = arith.mulf %13, %13 : f32
    %21 = arith.subf %19, %20 : f32
    %22 = vector.broadcast %13 : f32 to vector<32x256xf32>
    %23 = arith.subf %7, %22 : vector<32x256xf32>
    %cst_12 = arith.constant 9.99999974E-6 : f32
    %24 = arith.addf %21, %cst_12 : f32
    %25 = math.rsqrt %24 : f32
    %26 = vector.broadcast %25 : f32 to vector<32x256xf32>
    %27 = arith.mulf %23, %26 : vector<32x256xf32>
    %28 = arith.truncf %27 : vector<32x256xf32> to vector<32x256xbf16>
    %cst_13 = arith.constant dense<0.000000e+00> : vector<64x256xf32>
    %29 = tpu.matmul %0, %28, %cst_13 {dimension_numbers = #tpu.dot_dimension_numbers<[1], [0], [0], [1], [0, 0, 1, 1], [], []>} : vector<64x32xbf16>, vector<32x256xbf16>, vector<64x256xf32> -> vector<64x256xf32>
    %30 = vector.broadcast %1 : vector<64x1xf32> to vector<64x256xf32>
    %31 = arith.addf %29, %30 : vector<64x256xf32>
    %32 = vector.extract_strided_slice %31 {offsets = [0, 0], sizes = [16, 256], strides = [1, 1]} : vector<64x256xf32> to vector<16x256xf32>
    %33 = vector.extract_strided_slice %31 {offsets = [16, 0], sizes = [16, 256], strides = [1, 1]} : vector<64x256xf32> to vector<16x256xf32>
    %34 = vector.extract_strided_slice %31 {offsets = [32, 0], sizes = [32, 256], strides = [1, 1]} : vector<64x256xf32> to vector<32x256xf32>
    %35 = arith.truncf %32 : vector<16x256xf32> to vector<16x256xbf16>
    %36 = arith.truncf %33 : vector<16x256xf32> to vector<16x256xbf16>
    %cst_14 = arith.constant dense<0.000000e+00> : vector<256x256xf32>
    %37 = tpu.matmul %35, %36, %cst_14 {dimension_numbers = #tpu.dot_dimension_numbers<[0], [0], [1], [1], [0, 1, 1, 1], [], []>} : vector<16x256xbf16>, vector<16x256xbf16>, vector<256x256xf32> -> vector<256x256xf32>
    %cst_15 = arith.constant dense<0xFF800000> : vector<256xf32>
    %38 = vector.multi_reduction <maximumf>, %37, %cst_15 [1] : vector<256x256xf32> to vector<256xf32>
    %39 = vector.shape_cast %38 : vector<256xf32> to vector<256x1xf32>
    %40 = vector.broadcast %39 : vector<256x1xf32> to vector<256x256xf32>
    %41 = arith.subf %37, %40 : vector<256x256xf32>
    %42 = math.exp %41 : vector<256x256xf32>
    %cst_16 = arith.constant dense<0.000000e+00> : vector<256xf32>
    %43 = vector.multi_reduction <add>, %42, %cst_16 [1] : vector<256x256xf32> to vector<256xf32>
    %44 = vector.shape_cast %43 : vector<256xf32> to vector<256x1xf32>
    %45 = tpu.reciprocal %44 {approx = true} : vector<256x1xf32> -> vector<256x1xf32>
    %46 = vector.broadcast %45 : vector<256x1xf32> to vector<256x256xf32>
    %47 = arith.mulf %42, %46 : vector<256x256xf32>
    %48 = arith.truncf %47 : vector<256x256xf32> to vector<256x256xbf16>
    %49 = arith.truncf %34 : vector<32x256xf32> to vector<32x256xbf16>
    %cst_17 = arith.constant dense<0.000000e+00> : vector<32x256xf32>
    %50 = tpu.matmul %49, %48, %cst_17 {dimension_numbers = #tpu.dot_dimension_numbers<[1], [1], [0], [0], [0, 0, 1, 0], [], []>} : vector<32x256xbf16>, vector<256x256xbf16>, vector<32x256xf32> -> vector<32x256xf32>
    %cst_18 = arith.constant 0.000000e+00 : f32
    %51 = vector.broadcast %cst_18 : f32 to vector<32x256xf32>
    %52 = arith.maximumf %50, %51 : vector<32x256xf32>
    %cst_19 = arith.constant 0.000000e+00 : f32
    %53 = vector.broadcast %cst_19 : f32 to vector<32x256xf32>
    %54 = arith.maximumf %8, %53 : vector<32x256xf32>
    %55 = tpu.concatenate %52, %54 in 0 : vector<32x256xf32>, vector<32x256xf32> -> vector<64x256xf32>
    %56 = arith.truncf %55 : vector<64x256xf32> to vector<64x256xbf16>
    %cst_20 = arith.constant dense<0.000000e+00> : vector<64x256xf32>
    %57 = tpu.matmul %2, %56, %cst_20 {dimension_numbers = #tpu.dot_dimension_numbers<[1], [0], [0], [1], [0, 0, 1, 1], [], []>} : vector<64x64xbf16>, vector<64x256xbf16>, vector<64x256xf32> -> vector<64x256xf32>
    %58 = vector.broadcast %3 : vector<64x1xf32> to vector<64x256xf32>
    %59 = arith.addf %57, %58 : vector<64x256xf32>
    %60 = arith.index_cast %c0_i32 : i32 to index
    %c0_21 = arith.constant 0 : index
    %c0_22 = arith.constant 0 : index
    %61 = vector.load %arg6[%60, %c0_21, %c0_22] : memref<2x64x256xf32, #tpu.memory_space<vmem>>, vector<1x64x256xf32>
    %62 = vector.shape_cast %61 : vector<1x64x256xf32> to vector<64x256xf32>
    %63 = vector.shape_cast %59 : vector<64x256xf32> to vector<1x64x256xf32>
    tpu.vector_store %arg6[%60, %c0_21, %c0_22], %63 {strides = array<i32>} : memref<2x64x256xf32, #tpu.memory_space<vmem>>, vector<1x64x256xf32>,
    %c1_i32 = arith.constant 1 : i32
    %64 = arith.index_cast %c1_i32 : i32 to index
    %c0_23 = arith.constant 0 : index
    %c0_24 = arith.constant 0 : index
    %65 = vector.load %arg1[%64, %c0_23, %c0_24] : memref<2x64x256xf32, #tpu.memory_space<vmem>>, vector<1x64x256xf32>
    %66 = vector.shape_cast %65 : vector<1x64x256xf32> to vector<64x256xf32>
    %67 = vector.extract_strided_slice %66 {offsets = [0, 0], sizes = [32, 256], strides = [1, 1]} : vector<64x256xf32> to vector<32x256xf32>
    %68 = vector.extract_strided_slice %66 {offsets = [32, 0], sizes = [32, 256], strides = [1, 1]} : vector<64x256xf32> to vector<32x256xf32>
    %69 = vector.shape_cast %67 : vector<32x256xf32> to vector<1x32x256xf32>
    %cst_25 = arith.constant dense<0.000000e+00> : vector<1xf32>
    %70 = vector.multi_reduction <add>, %69, %cst_25 [1, 2] : vector<1x32x256xf32> to vector<1xf32>
    %71 = vector.shape_cast %70 : vector<1xf32> to vector<1x1x1xf32>
    %72 = vector.extract %71[0, 0, 0] : f32 from vector<1x1x1xf32>
    %cst_26 = arith.constant 1.22070313E-4 : f32
    %73 = arith.mulf %72, %cst_26 : f32
    %74 = arith.mulf %67, %67 : vector<32x256xf32>
    %75 = vector.shape_cast %74 : vector<32x256xf32> to vector<1x32x256xf32>
    %cst_27 = arith.constant dense<0.000000e+00> : vector<1xf32>
    %76 = vector.multi_reduction <add>, %75, %cst_27 [1, 2] : vector<1x32x256xf32> to vector<1xf32>
    %77 = vector.shape_cast %76 : vector<1xf32> to vector<1x1x1xf32>
    %78 = vector.extract %77[0, 0, 0] : f32 from vector<1x1x1xf32>
    %cst_28 = arith.constant 1.22070313E-4 : f32
    %79 = arith.mulf %78, %cst_28 : f32
    %80 = arith.mulf %73, %73 : f32
    %81 = arith.subf %79, %80 : f32
    %82 = vector.broadcast %73 : f32 to vector<32x256xf32>
    %83 = arith.subf %67, %82 : vector<32x256xf32>
    %cst_29 = arith.constant 9.99999974E-6 : f32
    %84 = arith.addf %81, %cst_29 : f32
    %85 = math.rsqrt %84 : f32
    %86 = vector.broadcast %85 : f32 to vector<32x256xf32>
    %87 = arith.mulf %83, %86 : vector<32x256xf32>
    %88 = arith.truncf %87 : vector<32x256xf32> to vector<32x256xbf16>
    %cst_30 = arith.constant dense<0.000000e+00> : vector<64x256xf32>
    %89 = tpu.matmul %0, %88, %cst_30 {dimension_numbers = #tpu.dot_dimension_numbers<[1], [0], [0], [1], [0, 0, 1, 1], [], []>} : vector<64x32xbf16>, vector<32x256xbf16>, vector<64x256xf32> -> vector<64x256xf32>
    %90 = vector.broadcast %1 : vector<64x1xf32> to vector<64x256xf32>
    %91 = arith.addf %89, %90 : vector<64x256xf32>
    %92 = vector.extract_strided_slice %91 {offsets = [0, 0], sizes = [16, 256], strides = [1, 1]} : vector<64x256xf32> to vector<16x256xf32>
    %93 = vector.extract_strided_slice %91 {offsets = [16, 0], sizes = [16, 256], strides = [1, 1]} : vector<64x256xf32> to vector<16x256xf32>
    %94 = vector.extract_strided_slice %91 {offsets = [32, 0], sizes = [32, 256], strides = [1, 1]} : vector<64x256xf32> to vector<32x256xf32>
    %95 = arith.truncf %92 : vector<16x256xf32> to vector<16x256xbf16>
    %96 = arith.truncf %93 : vector<16x256xf32> to vector<16x256xbf16>
    %cst_31 = arith.constant dense<0.000000e+00> : vector<256x256xf32>
    %97 = tpu.matmul %95, %96, %cst_31 {dimension_numbers = #tpu.dot_dimension_numbers<[0], [0], [1], [1], [0, 1, 1, 1], [], []>} : vector<16x256xbf16>, vector<16x256xbf16>, vector<256x256xf32> -> vector<256x256xf32>
    %cst_32 = arith.constant dense<0xFF800000> : vector<256xf32>
    %98 = vector.multi_reduction <maximumf>, %97, %cst_32 [1] : vector<256x256xf32> to vector<256xf32>
    %99 = vector.shape_cast %98 : vector<256xf32> to vector<256x1xf32>
    %100 = vector.broadcast %99 : vector<256x1xf32> to vector<256x256xf32>
    %101 = arith.subf %97, %100 : vector<256x256xf32>
    %102 = math.exp %101 : vector<256x256xf32>
    %cst_33 = arith.constant dense<0.000000e+00> : vector<256xf32>
    %103 = vector.multi_reduction <add>, %102, %cst_33 [1] : vector<256x256xf32> to vector<256xf32>
    %104 = vector.shape_cast %103 : vector<256xf32> to vector<256x1xf32>
    %105 = tpu.reciprocal %104 {approx = true} : vector<256x1xf32> -> vector<256x1xf32>
    %106 = vector.broadcast %105 : vector<256x1xf32> to vector<256x256xf32>
    %107 = arith.mulf %102, %106 : vector<256x256xf32>
    %108 = arith.truncf %107 : vector<256x256xf32> to vector<256x256xbf16>
    %109 = arith.truncf %94 : vector<32x256xf32> to vector<32x256xbf16>
    %cst_34 = arith.constant dense<0.000000e+00> : vector<32x256xf32>
    %110 = tpu.matmul %109, %108, %cst_34 {dimension_numbers = #tpu.dot_dimension_numbers<[1], [1], [0], [0], [0, 0, 1, 0], [], []>} : vector<32x256xbf16>, vector<256x256xbf16>, vector<32x256xf32> -> vector<32x256xf32>
    %cst_35 = arith.constant 0.000000e+00 : f32
    %111 = vector.broadcast %cst_35 : f32 to vector<32x256xf32>
    %112 = arith.maximumf %110, %111 : vector<32x256xf32>
    %cst_36 = arith.constant 0.000000e+00 : f32
    %113 = vector.broadcast %cst_36 : f32 to vector<32x256xf32>
    %114 = arith.maximumf %68, %113 : vector<32x256xf32>
    %115 = tpu.concatenate %112, %114 in 0 : vector<32x256xf32>, vector<32x256xf32> -> vector<64x256xf32>
    %116 = arith.truncf %115 : vector<64x256xf32> to vector<64x256xbf16>
    %cst_37 = arith.constant dense<0.000000e+00> : vector<64x256xf32>
    %117 = tpu.matmul %2, %116, %cst_37 {dimension_numbers = #tpu.dot_dimension_numbers<[1], [0], [0], [1], [0, 0, 1, 1], [], []>} : vector<64x64xbf16>, vector<64x256xbf16>, vector<64x256xf32> -> vector<64x256xf32>
    %118 = vector.broadcast %3 : vector<64x1xf32> to vector<64x256xf32>
    %119 = arith.addf %117, %118 : vector<64x256xf32>
    %120 = arith.index_cast %c1_i32 : i32 to index
    %c0_38 = arith.constant 0 : index
    %c0_39 = arith.constant 0 : index
    %121 = vector.load %arg6[%120, %c0_38, %c0_39] : memref<2x64x256xf32, #tpu.memory_space<vmem>>, vector<1x64x256xf32>
    %122 = vector.shape_cast %121 : vector<1x64x256xf32> to vector<64x256xf32>
    %123 = vector.shape_cast %119 : vector<64x256xf32> to vector<1x64x256xf32>
    tpu.vector_store %arg6[%120, %c0_38, %c0_39], %123 {strides = array<i32>} : memref<2x64x256xf32, #tpu.memory_space<vmem>>, vector<1x64x256xf32>,
    %c2_i32 = arith.constant 2 : i32
    return
  }
  func.func @transform_0(%arg0: i32) -> (i32, i32, i32) {
    %c0_i32 = arith.constant 0 : i32
    %c0_i32_0 = arith.constant 0 : i32
    %c0_i32_1 = arith.constant 0 : i32
    return %arg0, %c0_i32, %c0_i32_0 : i32, i32, i32
  }
  func.func @transform_1(%arg0: i32) -> (i32, i32) {
    %c0_i32 = arith.constant 0 : i32
    %c0_i32_0 = arith.constant 0 : i32
    %c0_i32_1 = arith.constant 0 : i32
    return %c0_i32, %c0_i32_0 : i32, i32
  }
  func.func @transform_2(%arg0: i32) -> (i32, i32) {
    %c0_i32 = arith.constant 0 : i32
    %c0_i32_0 = arith.constant 0 : i32
    %c0_i32_1 = arith.constant 0 : i32
    return %c0_i32, %c0_i32_0 : i32, i32
  }
  func.func @transform_3(%arg0: i32) -> (i32, i32) {
    %c0_i32 = arith.constant 0 : i32
    %c0_i32_0 = arith.constant 0 : i32
    %c0_i32_1 = arith.constant 0 : i32
    return %c0_i32, %c0_i32_0 : i32, i32
  }
  func.func @transform_4(%arg0: i32) -> (i32, i32) {
    %c0_i32 = arith.constant 0 : i32
    %c0_i32_0 = arith.constant 0 : i32
    %c0_i32_1 = arith.constant 0 : i32
    return %c0_i32, %c0_i32_0 : i32, i32
  }
  func.func @transform_5(%arg0: i32) -> (i32, i32, i32) {
    %c0_i32 = arith.constant 0 : i32
    %c0_i32_0 = arith.constant 0 : i32
    %c0_i32_1 = arith.constant 0 : i32
    return %arg0, %c0_i32, %c0_i32_0 : i32, i32, i32
  }
}

</mosaic_0001>

<llo_original>
// kernel: tpu_custom_call.1
$region0: #{tpu_custom_call.1}
  #allocation0 [shape = 'u32[]', space=smem, size = 0x4, offset = 0x4, fixed_abs, tag = 'smem constant byte address 0x4 - core index']
  #allocation1 [shape = 'u32[72,128]{1,0:T(1,128)}', space=vmem, size = 0x9000, scoped, tag = 'internal scratch']
  %s0 = inlined_call_operand.hbm [shape: f32[2,64,256], index: 0, kind: input, shape index: {}]
  %s1 = inlined_call_operand.vmem [shape: bf16[64,32], index: 1, kind: input, shape index: {}]
  %s2 = inlined_call_operand.vmem [shape: f32[64,1], index: 2, kind: input, shape index: {}]
  %s3 = inlined_call_operand.vmem [shape: bf16[64,64], index: 3, kind: input, shape index: {}]
  %s4 = inlined_call_operand.vmem [shape: f32[64,1], index: 4, kind: input, shape index: {}]
  %s5 = inlined_call_operand.hbm [shape: f32[2,64,256], index: 5, kind: output, shape index: {}]
  %s6 = sld [smem:[#allocation0]]
  $region34: #{tpu_custom_call.1} parent=0
    _
  %s8 = ssub.s32 1, %s6
  %s9 = scalar_select 0, %s8, %s6
  $region1: #{tpu_custom_call.1} parent=0
    #allocation2 [shape = 'u8[131072]{0}', space=vmem, size = 0x20000, scoped, tag = 'input window, operand 0, single buffered']
    #allocation3 [shape = 's32[1]{0}', space=sflag, size = 0x4, scoped, tag = 'scoped memory for tpu_custom_call.1']
    #allocation4 [shape = 's32[1]{0}', space=sflag, size = 0x4, scoped, tag = 'scoped memory for tpu_custom_call.1']
    #allocation5 [shape = 'u8[131072]{0}', space=vmem, size = 0x20000, scoped, tag = 'output window, operand 0, single buffered']
    %10 = vsyncpa [#allocation3], 0
    %11 = vsyncpa [#allocation4], 0
    // Predicated region
    $region2: #{tpu_custom_call.1} parent=1 // pred_check
      _
    $region3: #{tpu_custom_call.1} parent=1 // pred_check_branch
      %13 = sbr.rel (0) target = $region5
    $region4: #{tpu_custom_call.1} parent=1 // pred_region
      %15 = vsyncadd [#allocation3], 0
      %s16 = sshll.u32 %s0, 4
      %s17 = int_to_ptr.hbm [resolvable:$true] %s16
      %s18 = sshll.u32 [#allocation2], 4
      %s19 = int_to_ptr.vmem [resolvable:$true] %s18
      %24 = dma.hbm_to_vmem [thread:$0]  %s17, 4096, %s19, [#allocation3], 256, 256, 16
    $region5: #{tpu_custom_call.1} parent=1 // pred_fallthru
      _
    // Predicated region
    $region6: #{tpu_custom_call.1} parent=1 // pred_check
      _
    $region7: #{tpu_custom_call.1} parent=1 // pred_check_branch
      %26 = sbr.rel (0) target = $region9
    $region8: #{tpu_custom_call.1} parent=1 // pred_region
      _
    $region9: #{tpu_custom_call.1} parent=1 // pred_fallthru
      _
    // Predicated region
    $region10: #{tpu_custom_call.1} parent=1 // pred_check
      _
    $region11: #{tpu_custom_call.1} parent=1 // pred_check_branch
      %28 = sbr.rel (0) target = $region13
    $region12: #{tpu_custom_call.1} parent=1 // pred_region
      _
    $region13: #{tpu_custom_call.1} parent=1 // pred_fallthru
      _
    // Predicated region
    $region14: #{tpu_custom_call.1} parent=1 // pred_check
      _
    $region15: #{tpu_custom_call.1} parent=1 // pred_check_branch
      %30 = sbr.rel (0) target = $region17
    $region16: #{tpu_custom_call.1} parent=1 // pred_region
      _
    $region17: #{tpu_custom_call.1} parent=1 // pred_fallthru
      _
    // Predicated region
    $region18: #{tpu_custom_call.1} parent=1 // pred_check
      _
    $region19: #{tpu_custom_call.1} parent=1 // pred_check_branch
      %32 = sbr.rel (0) target = $region21
    $region20: #{tpu_custom_call.1} parent=1 // pred_region
      _
    $region21: #{tpu_custom_call.1} parent=1 // pred_fallthru
      _
    // Predicated region
    $region22: #{tpu_custom_call.1} parent=1 // pred_check
      _
    $region23: #{tpu_custom_call.1} parent=1 // pred_check_branch
      %34 = sbr.rel (0) target = $region25
    $region24: #{tpu_custom_call.1} parent=1 // pred_region
      %36 = dma.done [#allocation3], 4096
    $region25: #{tpu_custom_call.1} parent=1 // pred_fallthru
      _
    %v38 = vld [vmem:[%s1] sm:$0xf]
    %v39 = vld [vmem:[%s1 + $0x4] sm:$0xf]
    %v40 = vld [vmem:[%s1 + $0x8] sm:$0xf]
    %v41 = vld [vmem:[%s1 + $0xc] sm:$0xf]
    %v42 = vld [vmem:[%s1 + $0x10] sm:$0xf]
    %v43 = vld [vmem:[%s1 + $0x14] sm:$0xf]
    %v44 = vld [vmem:[%s1 + $0x18] sm:$0xf]
    %v45 = vld [vmem:[%s1 + $0x1c] sm:$0xf]
    %v46 = vld [vmem:[%s2] sm:$0xff]
    %v47 = vld [vmem:[%s2 + $0x8] sm:$0xff]
    %v48 = vld [vmem:[%s2 + $0x10] sm:$0xff]
    %v49 = vld [vmem:[%s2 + $0x18] sm:$0xff]
    %v50 = vld [vmem:[%s2 + $0x20] sm:$0xff]
    %v51 = vld [vmem:[%s2 + $0x28] sm:$0xff]
    %v52 = vld [vmem:[%s2 + $0x30] sm:$0xff]
    %v53 = vld [vmem:[%s2 + $0x38] sm:$0xff]
    %v54 = vld [vmem:[%s3] sm:$0xf]
    %v55 = vld [vmem:[%s3 + $0x4] sm:$0xf]
    %v56 = vld [vmem:[%s3 + $0x8] sm:$0xf]
    %v57 = vld [vmem:[%s3 + $0xc] sm:$0xf]
    %v58 = vld [vmem:[%s3 + $0x10] sm:$0xf]
    %v59 = vld [vmem:[%s3 + $0x14] sm:$0xf]
    %v60 = vld [vmem:[%s3 + $0x18] sm:$0xf]
    %v61 = vld [vmem:[%s3 + $0x1c] sm:$0xf]
    %v62 = vld [vmem:[%s4] sm:$0xff]
    %v63 = vld [vmem:[%s4 + $0x8] sm:$0xff]
    %v64 = vld [vmem:[%s4 + $0x10] sm:$0xff]
    %v65 = vld [vmem:[%s4 + $0x18] sm:$0xff]
    %v66 = vld [vmem:[%s4 + $0x20] sm:$0xff]
    %v67 = vld [vmem:[%s4 + $0x28] sm:$0xff]
    %v68 = vld [vmem:[%s4 + $0x30] sm:$0xff]
    %v69 = vld [vmem:[%s4 + $0x38] sm:$0xff]
    %v70 = vld [vmem:[#allocation2] sm:$0xff]
    %v71 = vld [vmem:[#allocation2 + $0x8] sm:$0xff]
    %v72 = vld [vmem:[#allocation2 + $0x10] sm:$0xff]
    %v73 = vld [vmem:[#allocation2 + $0x18] sm:$0xff]
    %v74 = vld [vmem:[#allocation2 + $0x20] sm:$0xff]
    %v75 = vld [vmem:[#allocation2 + $0x28] sm:$0xff]
    %v76 = vld [vmem:[#allocation2 + $0x30] sm:$0xff]
    %v77 = vld [vmem:[#allocation2 + $0x38] sm:$0xff]
    %v78 = vld [vmem:[#allocation2 + $0x40] sm:$0xff]
    %v79 = vld [vmem:[#allocation2 + $0x48] sm:$0xff]
    %v80 = vld [vmem:[#allocation2 + $0x50] sm:$0xff]
    %v81 = vld [vmem:[#allocation2 + $0x58] sm:$0xff]
    %v82 = vld [vmem:[#allocation2 + $0x60] sm:$0xff]
    %v83 = vld [vmem:[#allocation2 + $0x68] sm:$0xff]
    %v84 = vld [vmem:[#allocation2 + $0x70] sm:$0xff]
    %v85 = vld [vmem:[#allocation2 + $0x78] sm:$0xff]
    %v86 = vadd.f32 %v70, %v71
    %v87 = vadd.f32 %v86, %v72
    %v88 = vadd.f32 %v87, %v73
    %v89 = vadd.f32 %v88, %v74
    %v90 = vadd.f32 %v89, %v75
    %v91 = vadd.f32 %v90, %v76
    %v92 = vadd.f32 %v91, %v77
    %93 = vadd.xlane.f32.xlu0 %v92
    %v94 = vpop.xlane.xlu0 %93
    %v95 = vrot.slane %v94, 4
    %v96 = vadd.f32 %v94, %v95
    %v97 = vrot.slane %v96, 2
    %v98 = vadd.f32 %v96, %v97
    %v99 = vrot.slane %v98, 1
    %v100 = vadd.f32 %v98, %v99
    %s101 = vtos %v100
    %s102 = smul.f32 %s101, 0.00012207031
    %v103 = vmul.f32 %v70, %v70
    %v104 = vmul.f32 %v71, %v71
    %v105 = vmul.f32 %v72, %v72
    %v106 = vmul.f32 %v73, %v73
    %v107 = vmul.f32 %v74, %v74
    %v108 = vmul.f32 %v75, %v75
    %v109 = vmul.f32 %v76, %v76
    %v110 = vmul.f32 %v77, %v77
    %v111 = vadd.f32 %v103, %v104
    %v112 = vadd.f32 %v111, %v105
    %v113 = vadd.f32 %v112, %v106
    %v114 = vadd.f32 %v113, %v107
    %v115 = vadd.f32 %v114, %v108
    %v116 = vadd.f32 %v115, %v109
    %v117 = vadd.f32 %v116, %v110
    %118 = vadd.xlane.f32.xlu0 %v117
    %v119 = vpop.xlane.xlu0 %118
    %v120 = vrot.slane %v119, 4
    %v121 = vadd.f32 %v119, %v120
    %v122 = vrot.slane %v121, 2
    %v123 = vadd.f32 %v121, %v122
    %v124 = vrot.slane %v123, 1
    %v125 = vadd.f32 %v123, %v124
    %s126 = vtos %v125
    %s127 = smul.f32 %s126, 0.00012207031
    %s128 = smul.f32 %s102, %s102
    %s129 = ssub.f32 %s127, %s128
    %v130 = vstv %s102
    %v131 = vsub.f32 %v70, %v130
    %v132 = vsub.f32 %v71, %v130
    %v133 = vsub.f32 %v72, %v130
    %v134 = vsub.f32 %v73, %v130
    %v135 = vsub.f32 %v74, %v130
    %v136 = vsub.f32 %v75, %v130
    %v137 = vsub.f32 %v76, %v130
    %v138 = vsub.f32 %v77, %v130
    %s139 = sadd.f32 %s129, 1e-05
    %v140 = vstv %s139
    %v141 = vrsqrt.pop %v140
    %v142 = vmul.f32 %v141, %v140
    %v143 = vmul.f32 %v142, %v141
    %v144 = vmul.f32 0.5, %v143
    %v145 = vsub.f32 1.5, %v144
    %v146 = vmul.f32 %v141, %v145
    %vm147 = vweird.f32 %v140
    %vm148 = vweird.f32 %v141
    %vm149 = vmor %vm147, %vm148
    %v150 = vsel %vm149, %v141, %v146
    %s151 = vtos %v150
    %v152 = vstv %s151
    %v153 = vmul.f32 %v131, %v152
    %v154 = vmul.f32 %v132, %v152
    %v155 = vmul.f32 %v133, %v152
    %v156 = vmul.f32 %v134, %v152
    %v157 = vmul.f32 %v135, %v152
    %v158 = vmul.f32 %v136, %v152
    %v159 = vmul.f32 %v137, %v152
    %v160 = vmul.f32 %v138, %v152
    %v161 = vpack.c.bf16 %v155, %v153
    %v162 = vpack.c.bf16 %v156, %v154
    %v163 = vpack.c.bf16 %v159, %v157
    %v164 = vpack.c.bf16 %v160, %v158
    %166 = vset.pattern.permute.xlu0 0
    %167 = vperm.xlu0 %166, %v46
    %v168 = vpop.permute.xlu0 %167
    %171 = vset.pattern.permute.xlu0 0
    %172 = vperm.xlu0 %171, %v47
    %v173 = vpop.permute.xlu0 %172
    %176 = vset.pattern.permute.xlu0 0
    %177 = vperm.xlu0 %176, %v48
    %v178 = vpop.permute.xlu0 %177
    %181 = vset.pattern.permute.xlu0 0
    %182 = vperm.xlu0 %181, %v49
    %v183 = vpop.permute.xlu0 %182
    %186 = vset.pattern.permute.xlu0 0
    %187 = vperm.xlu0 %186, %v50
    %v188 = vpop.permute.xlu0 %187
    %191 = vset.pattern.permute.xlu0 0
    %192 = vperm.xlu0 %191, %v51
    %v193 = vpop.permute.xlu0 %192
    %196 = vset.pattern.permute.xlu0 0
    %197 = vperm.xlu0 %196, %v52
    %v198 = vpop.permute.xlu0 %197
    %201 = vset.pattern.permute.xlu0 0
    %202 = vperm.xlu0 %201, %v53
    %v203 = vpop.permute.xlu0 %202
    %v213 = vunpack.c.l.b16 %v38
    %v214 = vunpack.c.l.b16 %v39
    %v215 = vunpack.c.l.b16 %v40
    %v216 = vunpack.c.l.b16 %v41
    %v217 = vunpack.c.l.b16 %v42
    %v218 = vunpack.c.l.b16 %v43
    %v219 = vunpack.c.l.b16 %v44
    %v220 = vunpack.c.l.b16 %v45
    %v221 = vpack.c.b16 %v214, %v213
    %v222 = vpack.c.b16 %v216, %v215
    %v223 = vpack.c.b16 %v218, %v217
    %v224 = vpack.c.b16 %v220, %v219
    %vm225 = vcmask 261120
    %v227 = vsel %vm225, %v221, 0
    %v230 = vsel %vm225, %v222, 0
    %v233 = vsel %vm225, %v223, 0
    %v236 = vsel %vm225, %v224, 0
    %238 = vmatpush.bf16.msra.mxu0 0
    %239 = vmatpush.bf16.msra.mxu0 0
    %240 = vmatpush.bf16.msra.mxu0 0
    %241 = vmatpush.bf16.msra.mxu0 0
    %242 = vmatpush.bf16.msra.mxu0 0
    %243 = vmatpush.bf16.msra.mxu0 0
    %244 = vmatpush.bf16.msra.mxu0 %v163
    %245 = vmatpush.bf16.msra.mxu0 %v161
    %246 = vmatmul.bf16.gmra.mxu0 %v227
    %v247 = vpop.f32.mrf.mxu0
    %v248 = vadd.f32 %v168, %v247
    %v249 = vpop.f32.mrf.mxu0
    %v250 = vadd.f32 %v173, %v249
    %251 = vmatmul.bf16.gmra.mxu0 %v230
    %v252 = vpop.f32.mrf.mxu0
    %v253 = vadd.f32 %v178, %v252
    %v254 = vpop.f32.mrf.mxu0
    %v255 = vadd.f32 %v183, %v254
    %256 = vmatmul.bf16.gmra.mxu0 %v233
    %v257 = vpop.f32.mrf.mxu0
    %v258 = vadd.f32 %v188, %v257
    %v259 = vpop.f32.mrf.mxu0
    %v260 = vadd.f32 %v193, %v259
    %261 = vmatmul.bf16.gmra.mxu0 %v236
    %v262 = vpop.f32.mrf.mxu0
    %v263 = vadd.f32 %v198, %v262
    %v264 = vpop.f32.mrf.mxu0
    %v265 = vadd.f32 %v203, %v264
    %266 = vdwg.mxu0
    %267 = vmatpush.bf16.msra.mxu0 0
    %268 = vmatpush.bf16.msra.mxu0 0
    %269 = vmatpush.bf16.msra.mxu0 0
    %270 = vmatpush.bf16.msra.mxu0 0
    %271 = vmatpush.bf16.msra.mxu0 0
    %272 = vmatpush.bf16.msra.mxu0 0
    %273 = vmatpush.bf16.msra.mxu0 %v164
    %274 = vmatpush.bf16.msra.mxu0 %v162
    %275 = vmatmul.bf16.gmra.mxu0 %v227
    %v276 = vpop.f32.mrf.mxu0
    %v277 = vadd.f32 %v168, %v276
    %v278 = vpop.f32.mrf.mxu0
    %v279 = vadd.f32 %v173, %v278
    %280 = vmatmul.bf16.gmra.mxu0 %v230
    %v281 = vpop.f32.mrf.mxu0
    %v282 = vadd.f32 %v178, %v281
    %v283 = vpop.f32.mrf.mxu0
    %v284 = vadd.f32 %v183, %v283
    %285 = vmatmul.bf16.gmra.mxu0 %v233
    %v286 = vpop.f32.mrf.mxu0
    %v287 = vadd.f32 %v188, %v286
    %v288 = vpop.f32.mrf.mxu0
    %v289 = vadd.f32 %v193, %v288
    %290 = vmatmul.bf16.gmra.mxu0 %v236
    %v291 = vpop.f32.mrf.mxu0
    %v292 = vadd.f32 %v198, %v291
    %v293 = vpop.f32.mrf.mxu0
    %v294 = vadd.f32 %v203, %v293
    %295 = vdwg.mxu0
    %v296 = vpack.c.bf16 %v250, %v248
    %v297 = vpack.c.bf16 %v279, %v277
    %v298 = vpack.c.bf16 %v255, %v253
    %v299 = vpack.c.bf16 %v284, %v282
    %300 = vxpose.binary.xlu0.c.b16.start [1/16] %v297, %v296, 128
    %301 = vxpose.binary.xlu0.c.b16.cont [2/16] 0, 0, 128
    %302 = vxpose.binary.xlu0.c.b16.cont [3/16] 0, 0, 128
    %303 = vxpose.binary.xlu0.c.b16.cont [4/16] 0, 0, 128
    %304 = vxpose.binary.xlu0.c.b16.cont [5/16] 0, 0, 128
    %305 = vxpose.binary.xlu0.c.b16.cont [6/16] 0, 0, 128
    %306 = vxpose.binary.xlu0.c.b16.cont [7/16] 0, 0, 128
    %307 = vxpose.binary.xlu0.c.b16.end [8/16] 0, 0, 128
    %v308 = vpop.trf.xlu0
    %v309 = vpop.trf.xlu0
    %v310 = vpop.trf.xlu0
    %v311 = vpop.trf.xlu0
    %v312 = vpop.trf.xlu0
    %v313 = vpop.trf.xlu0
    %v314 = vpop.trf.xlu0
    %v315 = vpop.trf.xlu0
    %v316 = vpop.trf.xlu0
    %v317 = vpop.trf.xlu0
    %v318 = vpop.trf.xlu0
    %v319 = vpop.trf.xlu0
    %v320 = vpop.trf.xlu0
    %v321 = vpop.trf.xlu0
    %v322 = vpop.trf.xlu0
    %v323 = vpop.trf.xlu0
    %vm324 = vcmask 130048
    %v326 = vsel %vm324, %v308, 0
    %v329 = vsel %vm324, %v310, 0
    %v332 = vsel %vm324, %v312, 0
    %v335 = vsel %vm324, %v314, 0
    %v338 = vsel %vm324, %v316, 0
    %v341 = vsel %vm324, %v318, 0
    %v344 = vsel %vm324, %v320, 0
    %v347 = vsel %vm324, %v322, 0
    %v350 = vsel %vm324, %v309, 0
    %v353 = vsel %vm324, %v311, 0
    %v356 = vsel %vm324, %v313, 0
    %v359 = vsel %vm324, %v315, 0
    %v362 = vsel %vm324, %v317, 0
    %v365 = vsel %vm324, %v319, 0
    %v368 = vsel %vm324, %v321, 0
    %v371 = vsel %vm324, %v323, 0
    %373 = vmatpush.bf16.msra.mxu0 0
    %374 = vmatpush.bf16.msra.mxu0 0
    %375 = vmatpush.bf16.msra.mxu0 0
    %376 = vmatpush.bf16.msra.mxu0 0
    %377 = vmatpush.bf16.msra.mxu0 0
    %378 = vmatpush.bf16.msra.mxu0 0
    %379 = vmatpush.bf16.msra.mxu0 0
    %380 = vmatpush.bf16.msra.mxu0 %v298
    %381 = vmatmul.bf16.gmra.mxu0 %v326
    %v382 = vpop.f32.mrf.mxu0
    %v383 = vadd.f32 0.0, %v382
    %v384 = vpop.f32.mrf.mxu0
    %v385 = vadd.f32 0.0, %v384
    %386 = vmatmul.bf16.gmra.mxu0 %v329
    %v387 = vpop.f32.mrf.mxu0
    %v388 = vadd.f32 0.0, %v387
    %v389 = vpop.f32.mrf.mxu0
    %v390 = vadd.f32 0.0, %v389
    %391 = vmatmul.bf16.gmra.mxu0 %v332
    %v392 = vpop.f32.mrf.mxu0
    %v393 = vadd.f32 0.0, %v392
    %v394 = vpop.f32.mrf.mxu0
    %v395 = vadd.f32 0.0, %v394
    %396 = vmatmul.bf16.gmra.mxu0 %v335
    %v397 = vpop.f32.mrf.mxu0
    %v398 = vadd.f32 0.0, %v397
    %v399 = vpop.f32.mrf.mxu0
    %v400 = vadd.f32 0.0, %v399
    %401 = vmatmul.bf16.gmra.mxu0 %v338
    %v402 = vpop.f32.mrf.mxu0
    %v403 = vadd.f32 0.0, %v402
    %v404 = vpop.f32.mrf.mxu0
    %v405 = vadd.f32 0.0, %v404
    %406 = vmatmul.bf16.gmra.mxu0 %v341
    %v407 = vpop.f32.mrf.mxu0
    %v408 = vadd.f32 0.0, %v407
    %v409 = vpop.f32.mrf.mxu0
    %v410 = vadd.f32 0.0, %v409
    %411 = vmatmul.bf16.gmra.mxu0 %v344
    %v412 = vpop.f32.mrf.mxu0
    %v413 = vadd.f32 0.0, %v412
    %v414 = vpop.f32.mrf.mxu0
    %v415 = vadd.f32 0.0, %v414
    %416 = vmatmul.bf16.gmra.mxu0 %v347
    %v417 = vpop.f32.mrf.mxu0
    %v418 = vadd.f32 0.0, %v417
    %v419 = vpop.f32.mrf.mxu0
    %v420 = vadd.f32 0.0, %v419
    %421 = vmatmul.bf16.gmra.mxu0 %v350
    %v422 = vpop.f32.mrf.mxu0
    %v423 = vadd.f32 0.0, %v422
    %v424 = vpop.f32.mrf.mxu0
    %v425 = vadd.f32 0.0, %v424
    %426 = vmatmul.bf16.gmra.mxu0 %v353
    %v427 = vpop.f32.mrf.mxu0
    %v428 = vadd.f32 0.0, %v427
    %v429 = vpop.f32.mrf.mxu0
    %v430 = vadd.f32 0.0, %v429
    %431 = vmatmul.bf16.gmra.mxu0 %v356
    %v432 = vpop.f32.mrf.mxu0
    %v433 = vadd.f32 0.0, %v432
    %v434 = vpop.f32.mrf.mxu0
    %v435 = vadd.f32 0.0, %v434
    %436 = vmatmul.bf16.gmra.mxu0 %v359
    %v437 = vpop.f32.mrf.mxu0
    %v438 = vadd.f32 0.0, %v437
    %v439 = vpop.f32.mrf.mxu0
    %v440 = vadd.f32 0.0, %v439
    %441 = vmatmul.bf16.gmra.mxu0 %v362
    %v442 = vpop.f32.mrf.mxu0
    %v443 = vadd.f32 0.0, %v442
    %v444 = vpop.f32.mrf.mxu0
    %v445 = vadd.f32 0.0, %v444
    %446 = vmatmul.bf16.gmra.mxu0 %v365
    %v447 = vpop.f32.mrf.mxu0
    %v448 = vadd.f32 0.0, %v447
    %v449 = vpop.f32.mrf.mxu0
    %v450 = vadd.f32 0.0, %v449
    %451 = vmatmul.bf16.gmra.mxu0 %v368
    %v452 = vpop.f32.mrf.mxu0
    %v453 = vadd.f32 0.0, %v452
    %v454 = vpop.f32.mrf.mxu0
    %v455 = vadd.f32 0.0, %v454
    %456 = vmatmul.bf16.gmra.mxu0 %v371
    %v457 = vpop.f32.mrf.mxu0
    %v458 = vadd.f32 0.0, %v457
    %v459 = vpop.f32.mrf.mxu0
    %v460 = vadd.f32 0.0, %v459
    %461 = vdwg.mxu0
    %462 = vmatpush.bf16.msra.mxu0 0
    %463 = vmatpush.bf16.msra.mxu0 0
    %464 = vmatpush.bf16.msra.mxu0 0
    %465 = vmatpush.bf16.msra.mxu0 0
    %466 = vmatpush.bf16.msra.mxu0 0
    %467 = vmatpush.bf16.msra.mxu0 0
    %468 = vmatpush.bf16.msra.mxu0 0
    %469 = vmatpush.bf16.msra.mxu0 %v299
    %470 = vmatmul.bf16.gmra.mxu0 %v326
    %v471 = vpop.f32.mrf.mxu0
    %v472 = vadd.f32 0.0, %v471
    %v473 = vpop.f32.mrf.mxu0
    %v474 = vadd.f32 0.0, %v473
    %475 = vmatmul.bf16.gmra.mxu0 %v329
    %v476 = vpop.f32.mrf.mxu0
    %v477 = vadd.f32 0.0, %v476
    %v478 = vpop.f32.mrf.mxu0
    %v479 = vadd.f32 0.0, %v478
    %480 = vmatmul.bf16.gmra.mxu0 %v332
    %v481 = vpop.f32.mrf.mxu0
    %v482 = vadd.f32 0.0, %v481
    %v483 = vpop.f32.mrf.mxu0
    %v484 = vadd.f32 0.0, %v483
    %485 = vmatmul.bf16.gmra.mxu0 %v335
    %v486 = vpop.f32.mrf.mxu0
    %v487 = vadd.f32 0.0, %v486
    %v488 = vpop.f32.mrf.mxu0
    %v489 = vadd.f32 0.0, %v488
    %490 = vmatmul.bf16.gmra.mxu0 %v338
    %v491 = vpop.f32.mrf.mxu0
    %v492 = vadd.f32 0.0, %v491
    %v493 = vpop.f32.mrf.mxu0
    %v494 = vadd.f32 0.0, %v493
    %495 = vmatmul.bf16.gmra.mxu0 %v341
    %v496 = vpop.f32.mrf.mxu0
    %v497 = vadd.f32 0.0, %v496
    %v498 = vpop.f32.mrf.mxu0
    %v499 = vadd.f32 0.0, %v498
    %500 = vmatmul.bf16.gmra.mxu0 %v344
    %v501 = vpop.f32.mrf.mxu0
    %v502 = vadd.f32 0.0, %v501
    %v503 = vpop.f32.mrf.mxu0
    %v504 = vadd.f32 0.0, %v503
    %505 = vmatmul.bf16.gmra.mxu0 %v347
    %v506 = vpop.f32.mrf.mxu0
    %v507 = vadd.f32 0.0, %v506
    %v508 = vpop.f32.mrf.mxu0
    %v509 = vadd.f32 0.0, %v508
    %510 = vmatmul.bf16.gmra.mxu0 %v350
    %v511 = vpop.f32.mrf.mxu0
    %v512 = vadd.f32 0.0, %v511
    %v513 = vpop.f32.mrf.mxu0
    %v514 = vadd.f32 0.0, %v513
    %515 = vmatmul.bf16.gmra.mxu0 %v353
    %v516 = vpop.f32.mrf.mxu0
    %v517 = vadd.f32 0.0, %v516
    %v518 = vpop.f32.mrf.mxu0
    %v519 = vadd.f32 0.0, %v518
    %520 = vmatmul.bf16.gmra.mxu0 %v356
    %v521 = vpop.f32.mrf.mxu0
    %v522 = vadd.f32 0.0, %v521
    %v523 = vpop.f32.mrf.mxu0
    %v524 = vadd.f32 0.0, %v523
    %525 = vmatmul.bf16.gmra.mxu0 %v359
    %v526 = vpop.f32.mrf.mxu0
    %v527 = vadd.f32 0.0, %v526
    %v528 = vpop.f32.mrf.mxu0
    %v529 = vadd.f32 0.0, %v528
    %530 = vmatmul.bf16.gmra.mxu0 %v362
    %v531 = vpop.f32.mrf.mxu0
    %v532 = vadd.f32 0.0, %v531
    %v533 = vpop.f32.mrf.mxu0
    %v534 = vadd.f32 0.0, %v533
    %535 = vmatmul.bf16.gmra.mxu0 %v365
    %v536 = vpop.f32.mrf.mxu0
    %v537 = vadd.f32 0.0, %v536
    %v538 = vpop.f32.mrf.mxu0
    %v539 = vadd.f32 0.0, %v538
    %540 = vmatmul.bf16.gmra.mxu0 %v368
    %v541 = vpop.f32.mrf.mxu0
    %v542 = vadd.f32 0.0, %v541
    %v543 = vpop.f32.mrf.mxu0
    %v544 = vadd.f32 0.0, %v543
    %545 = vmatmul.bf16.gmra.mxu0 %v371
    %v546 = vpop.f32.mrf.mxu0
    %v547 = vadd.f32 0.0, %v546
    %v548 = vpop.f32.mrf.mxu0
    %v549 = vadd.f32 0.0, %v548
    %550 = vdwg.mxu0
    %v551 = vmax.f32 %v383, %v472
    %552 = vmax.xlane.f32.xlu0 %v551
    %v553 = vpop.xlane.xlu0 %552
    %v554 = vmax.f32 %v385, %v474
    %555 = vmax.xlane.f32.xlu0 %v554
    %v556 = vpop.xlane.xlu0 %555
    %v557 = vmax.f32 %v388, %v477
    %558 = vmax.xlane.f32.xlu0 %v557
    %v559 = vpop.xlane.xlu0 %558
    %v560 = vmax.f32 %v390, %v479
    %561 = vmax.xlane.f32.xlu0 %v560
    %v562 = vpop.xlane.xlu0 %561
    %v563 = vmax.f32 %v393, %v482
    %564 = vmax.xlane.f32.xlu0 %v563
    %v565 = vpop.xlane.xlu0 %564
    %v566 = vmax.f32 %v395, %v484
    %567 = vmax.xlane.f32.xlu0 %v566
    %v568 = vpop.xlane.xlu0 %567
    %v569 = vmax.f32 %v398, %v487
    %570 = vmax.xlane.f32.xlu0 %v569
    %v571 = vpop.xlane.xlu0 %570
    %v572 = vmax.f32 %v400, %v489
    %573 = vmax.xlane.f32.xlu0 %v572
    %v574 = vpop.xlane.xlu0 %573
    %v575 = vmax.f32 %v403, %v492
    %576 = vmax.xlane.f32.xlu0 %v575
    %v577 = vpop.xlane.xlu0 %576
    %v578 = vmax.f32 %v405, %v494
    %579 = vmax.xlane.f32.xlu0 %v578
    %v580 = vpop.xlane.xlu0 %579
    %v581 = vmax.f32 %v408, %v497
    %582 = vmax.xlane.f32.xlu0 %v581
    %v583 = vpop.xlane.xlu0 %582
    %v584 = vmax.f32 %v410, %v499
    %585 = vmax.xlane.f32.xlu0 %v584
    %v586 = vpop.xlane.xlu0 %585
    %v587 = vmax.f32 %v413, %v502
    %588 = vmax.xlane.f32.xlu0 %v587
    %v589 = vpop.xlane.xlu0 %588
    %v590 = vmax.f32 %v415, %v504
    %591 = vmax.xlane.f32.xlu0 %v590
    %v592 = vpop.xlane.xlu0 %591
    %v593 = vmax.f32 %v418, %v507
    %594 = vmax.xlane.f32.xlu0 %v593
    %v595 = vpop.xlane.xlu0 %594
    %v596 = vmax.f32 %v420, %v509
    %597 = vmax.xlane.f32.xlu0 %v596
    %v598 = vpop.xlane.xlu0 %597
    %v599 = vmax.f32 %v423, %v512
    %600 = vmax.xlane.f32.xlu0 %v599
    %v601 = vpop.xlane.xlu0 %600
    %v602 = vmax.f32 %v425, %v514
    %603 = vmax.xlane.f32.xlu0 %v602
    %v604 = vpop.xlane.xlu0 %603
    %v605 = vmax.f32 %v428, %v517
    %606 = vmax.xlane.f32.xlu0 %v605
    %v607 = vpop.xlane.xlu0 %606
    %v608 = vmax.f32 %v430, %v519
    %609 = vmax.xlane.f32.xlu0 %v608
    %v610 = vpop.xlane.xlu0 %609
    %v611 = vmax.f32 %v433, %v522
    %612 = vmax.xlane.f32.xlu0 %v611
    %v613 = vpop.xlane.xlu0 %612
    %v614 = vmax.f32 %v435, %v524
    %615 = vmax.xlane.f32.xlu0 %v614
    %v616 = vpop.xlane.xlu0 %615
    %v617 = vmax.f32 %v438, %v527
    %618 = vmax.xlane.f32.xlu0 %v617
    %v619 = vpop.xlane.xlu0 %618
    %v620 = vmax.f32 %v440, %v529
    %621 = vmax.xlane.f32.xlu0 %v620
    %v622 = vpop.xlane.xlu0 %621
    %v623 = vmax.f32 %v443, %v532
    %624 = vmax.xlane.f32.xlu0 %v623
    %v625 = vpop.xlane.xlu0 %624
    %v626 = vmax.f32 %v445, %v534
    %627 = vmax.xlane.f32.xlu0 %v626
    %v628 = vpop.xlane.xlu0 %627
    %v629 = vmax.f32 %v448, %v537
    %630 = vmax.xlane.f32.xlu0 %v629
    %v631 = vpop.xlane.xlu0 %630
    %v632 = vmax.f32 %v450, %v539
    %633 = vmax.xlane.f32.xlu0 %v632
    %v634 = vpop.xlane.xlu0 %633
    %v635 = vmax.f32 %v453, %v542
    %636 = vmax.xlane.f32.xlu0 %v635
    %v637 = vpop.xlane.xlu0 %636
    %v638 = vmax.f32 %v455, %v544
    %639 = vmax.xlane.f32.xlu0 %v638
    %v640 = vpop.xlane.xlu0 %639
    %v641 = vmax.f32 %v458, %v547
    %642 = vmax.xlane.f32.xlu0 %v641
    %v643 = vpop.xlane.xlu0 %642
    %v644 = vmax.f32 %v460, %v549
    %645 = vmax.xlane.f32.xlu0 %v644
    %v646 = vpop.xlane.xlu0 %645
    %v647 = vsub.f32 %v383, %v553
    %v648 = vsub.f32 %v472, %v553
    %v649 = vsub.f32 %v385, %v556
    %v650 = vsub.f32 %v474, %v556
    %v651 = vsub.f32 %v388, %v559
    %v652 = vsub.f32 %v477, %v559
    %v653 = vsub.f32 %v390, %v562
    %v654 = vsub.f32 %v479, %v562
    %v655 = vsub.f32 %v393, %v565
    %v656 = vsub.f32 %v482, %v565
    %v657 = vsub.f32 %v395, %v568
    %v658 = vsub.f32 %v484, %v568
    %v659 = vsub.f32 %v398, %v571
    %v660 = vsub.f32 %v487, %v571
    %v661 = vsub.f32 %v400, %v574
    %v662 = vsub.f32 %v489, %v574
    %v663 = vsub.f32 %v403, %v577
    %v664 = vsub.f32 %v492, %v577
    %v665 = vsub.f32 %v405, %v580
    %v666 = vsub.f32 %v494, %v580
    %v667 = vsub.f32 %v408, %v583
    %v668 = vsub.f32 %v497, %v583
    %v669 = vsub.f32 %v410, %v586
    %v670 = vsub.f32 %v499, %v586
    %v671 = vsub.f32 %v413, %v589
    %v672 = vsub.f32 %v502, %v589
    %v673 = vsub.f32 %v415, %v592
    %v674 = vsub.f32 %v504, %v592
    %v675 = vsub.f32 %v418, %v595
    %v676 = vsub.f32 %v507, %v595
    %v677 = vsub.f32 %v420, %v598
    %v678 = vsub.f32 %v509, %v598
    %v679 = vsub.f32 %v423, %v601
    %v680 = vsub.f32 %v512, %v601
    %v681 = vsub.f32 %v425, %v604
    %v682 = vsub.f32 %v514, %v604
    %v683 = vsub.f32 %v428, %v607
    %v684 = vsub.f32 %v517, %v607
    %v685 = vsub.f32 %v430, %v610
    %v686 = vsub.f32 %v519, %v610
    %v687 = vsub.f32 %v433, %v613
    %v688 = vsub.f32 %v522, %v613
    %v689 = vsub.f32 %v435, %v616
    %v690 = vsub.f32 %v524, %v616
    %v691 = vsub.f32 %v438, %v619
    %v692 = vsub.f32 %v527, %v619
    %v693 = vsub.f32 %v440, %v622
    %v694 = vsub.f32 %v529, %v622
    %v695 = vsub.f32 %v443, %v625
    %v696 = vsub.f32 %v532, %v625
    %v697 = vsub.f32 %v445, %v628
    %v698 = vsub.f32 %v534, %v628
    %v699 = vsub.f32 %v448, %v631
    %v700 = vsub.f32 %v537, %v631
    %v701 = vsub.f32 %v450, %v634
    %v702 = vsub.f32 %v539, %v634
    %v703 = vsub.f32 %v453, %v637
    %v704 = vsub.f32 %v542, %v637
    %v705 = vsub.f32 %v455, %v640
    %v706 = vsub.f32 %v544, %v640
    %v707 = vsub.f32 %v458, %v643
    %v708 = vsub.f32 %v547, %v643
    %v709 = vsub.f32 %v460, %v646
    %v710 = vsub.f32 %v549, %v646
    %v711 = vmul.f32 %v647, 1.442695
    %v712 = vpow.pop %v711
    %v713 = vmul.f32 %v648, 1.442695
    %v714 = vpow.pop %v713
    %v715 = vmul.f32 %v649, 1.442695
    %v716 = vpow.pop %v715
    %v717 = vmul.f32 %v650, 1.442695
    %v718 = vpow.pop %v717
    %v719 = vmul.f32 %v651, 1.442695
    %v720 = vpow.pop %v719
    %v721 = vmul.f32 %v652, 1.442695
    %v722 = vpow.pop %v721
    %v723 = vmul.f32 %v653, 1.442695
    %v724 = vpow.pop %v723
    %v725 = vmul.f32 %v654, 1.442695
    %v726 = vpow.pop %v725
    %v727 = vmul.f32 %v655, 1.442695
    %v728 = vpow.pop %v727
    %v729 = vmul.f32 %v656, 1.442695
    %v730 = vpow.pop %v729
    %v731 = vmul.f32 %v657, 1.442695
    %v732 = vpow.pop %v731
    %v733 = vmul.f32 %v658, 1.442695
    %v734 = vpow.pop %v733
    %v735 = vmul.f32 %v659, 1.442695
    %v736 = vpow.pop %v735
    %v737 = vmul.f32 %v660, 1.442695
    %v738 = vpow.pop %v737
    %v739 = vmul.f32 %v661, 1.442695
    %v740 = vpow.pop %v739
    %v741 = vmul.f32 %v662, 1.442695
    %v742 = vpow.pop %v741
    %v743 = vmul.f32 %v663, 1.442695
    %v744 = vpow.pop %v743
    %v745 = vmul.f32 %v664, 1.442695
    %v746 = vpow.pop %v745
    %v747 = vmul.f32 %v665, 1.442695
    %v748 = vpow.pop %v747
    %v749 = vmul.f32 %v666, 1.442695
    %v750 = vpow.pop %v749
    %v751 = vmul.f32 %v667, 1.442695
    %v752 = vpow.pop %v751
    %v753 = vmul.f32 %v668, 1.442695
    %v754 = vpow.pop %v753
    %v755 = vmul.f32 %v669, 1.442695
    %v756 = vpow.pop %v755
    %v757 = vmul.f32 %v670, 1.442695
    %v758 = vpow.pop %v757
    %v759 = vmul.f32 %v671, 1.442695
    %v760 = vpow.pop %v759
    %v761 = vmul.f32 %v672, 1.442695
    %v762 = vpow.pop %v761
    %v763 = vmul.f32 %v673, 1.442695
    %v764 = vpow.pop %v763
    %v765 = vmul.f32 %v674, 1.442695
    %v766 = vpow.pop %v765
    %v767 = vmul.f32 %v675, 1.442695
    %v768 = vpow.pop %v767
    %v769 = vmul.f32 %v676, 1.442695
    %v770 = vpow.pop %v769
    %v771 = vmul.f32 %v677, 1.442695
    %v772 = vpow.pop %v771
    %v773 = vmul.f32 %v678, 1.442695
    %v774 = vpow.pop %v773
    %v775 = vmul.f32 %v679, 1.442695
    %v776 = vpow.pop %v775
    %v777 = vmul.f32 %v680, 1.442695
    %v778 = vpow.pop %v777
    %v779 = vmul.f32 %v681, 1.442695
    %v780 = vpow.pop %v779
    %v781 = vmul.f32 %v682, 1.442695
    %v782 = vpow.pop %v781
    %v783 = vmul.f32 %v683, 1.442695
    %v784 = vpow.pop %v783
    %v785 = vmul.f32 %v684, 1.442695
    %v786 = vpow.pop %v785
    %v787 = vmul.f32 %v685, 1.442695
    %v788 = vpow.pop %v787
    %v789 = vmul.f32 %v686, 1.442695
    %v790 = vpow.pop %v789
    %v791 = vmul.f32 %v687, 1.442695
    %v792 = vpow.pop %v791
    %v793 = vmul.f32 %v688, 1.442695
    %v794 = vpow.pop %v793
    %v795 = vmul.f32 %v689, 1.442695
    %v796 = vpow.pop %v795
    %v797 = vmul.f32 %v690, 1.442695
    %v798 = vpow.pop %v797
    %v799 = vmul.f32 %v691, 1.442695
    %v800 = vpow.pop %v799
    %v801 = vmul.f32 %v692, 1.442695
    %v802 = vpow.pop %v801
    %v803 = vmul.f32 %v693, 1.442695
    %v804 = vpow.pop %v803
    %v805 = vmul.f32 %v694, 1.442695
    %v806 = vpow.pop %v805
    %v807 = vmul.f32 %v695, 1.442695
    %v808 = vpow.pop %v807
    %v809 = vmul.f32 %v696, 1.442695
    %v810 = vpow.pop %v809
    %v811 = vmul.f32 %v697, 1.442695
    %v812 = vpow.pop %v811
    %v813 = vmul.f32 %v698, 1.442695
    %v814 = vpow.pop %v813
    %v815 = vmul.f32 %v699, 1.442695
    %v816 = vpow.pop %v815
    %v817 = vmul.f32 %v700, 1.442695
    %v818 = vpow.pop %v817
    %v819 = vmul.f32 %v701, 1.442695
    %v820 = vpow.pop %v819
    %v821 = vmul.f32 %v702, 1.442695
    %v822 = vpow.pop %v821
    %v823 = vmul.f32 %v703, 1.442695
    %v824 = vpow.pop %v823
    %v825 = vmul.f32 %v704, 1.442695
    %v826 = vpow.pop %v825
    %v827 = vmul.f32 %v705, 1.442695
    %v828 = vpow.pop %v827
    %v829 = vmul.f32 %v706, 1.442695
    %v830 = vpow.pop %v829
    %v831 = vmul.f32 %v707, 1.442695
    %v832 = vpow.pop %v831
    %v833 = vmul.f32 %v708, 1.442695
    %v834 = vpow.pop %v833
    %v835 = vmul.f32 %v709, 1.442695
    %v836 = vpow.pop %v835
    %v837 = vmul.f32 %v710, 1.442695
    %v838 = vpow.pop %v837
    %v839 = vadd.f32 %v712, %v714
    %840 = vadd.xlane.f32.xlu0 %v839
    %v841 = vpop.xlane.xlu0 %840
    %v842 = vadd.f32 %v716, %v718
    %843 = vadd.xlane.f32.xlu0 %v842
    %v844 = vpop.xlane.xlu0 %843
    %v845 = vadd.f32 %v720, %v722
    %846 = vadd.xlane.f32.xlu0 %v845
    %v847 = vpop.xlane.xlu0 %846
    %v848 = vadd.f32 %v724, %v726
    %849 = vadd.xlane.f32.xlu0 %v848
    %v850 = vpop.xlane.xlu0 %849
    %v851 = vadd.f32 %v728, %v730
    %852 = vadd.xlane.f32.xlu0 %v851
    %v853 = vpop.xlane.xlu0 %852
    %v854 = vadd.f32 %v732, %v734
    %855 = vadd.xlane.f32.xlu0 %v854
    %v856 = vpop.xlane.xlu0 %855
    %v857 = vadd.f32 %v736, %v738
    %858 = vadd.xlane.f32.xlu0 %v857
    %v859 = vpop.xlane.xlu0 %858
    %v860 = vadd.f32 %v740, %v742
    %861 = vadd.xlane.f32.xlu0 %v860
    %v862 = vpop.xlane.xlu0 %861
    %v863 = vadd.f32 %v744, %v746
    %864 = vadd.xlane.f32.xlu0 %v863
    %v865 = vpop.xlane.xlu0 %864
    %v866 = vadd.f32 %v748, %v750
    %867 = vadd.xlane.f32.xlu0 %v866
    %v868 = vpop.xlane.xlu0 %867
    %v869 = vadd.f32 %v752, %v754
    %870 = vadd.xlane.f32.xlu0 %v869
    %v871 = vpop.xlane.xlu0 %870
    %v872 = vadd.f32 %v756, %v758
    %873 = vadd.xlane.f32.xlu0 %v872
    %v874 = vpop.xlane.xlu0 %873
    %v875 = vadd.f32 %v760, %v762
    %876 = vadd.xlane.f32.xlu0 %v875
    %v877 = vpop.xlane.xlu0 %876
    %v878 = vadd.f32 %v764, %v766
    %879 = vadd.xlane.f32.xlu0 %v878
    %v880 = vpop.xlane.xlu0 %879
    %v881 = vadd.f32 %v768, %v770
    %882 = vadd.xlane.f32.xlu0 %v881
    %v883 = vpop.xlane.xlu0 %882
    %v884 = vadd.f32 %v772, %v774
    %885 = vadd.xlane.f32.xlu0 %v884
    %v886 = vpop.xlane.xlu0 %885
    %v887 = vadd.f32 %v776, %v778
    %888 = vadd.xlane.f32.xlu0 %v887
    %v889 = vpop.xlane.xlu0 %888
    %v890 = vadd.f32 %v780, %v782
    %891 = vadd.xlane.f32.xlu0 %v890
    %v892 = vpop.xlane.xlu0 %891
    %v893 = vadd.f32 %v784, %v786
    %894 = vadd.xlane.f32.xlu0 %v893
    %v895 = vpop.xlane.xlu0 %894
    %v896 = vadd.f32 %v788, %v790
    %897 = vadd.xlane.f32.xlu0 %v896
    %v898 = vpop.xlane.xlu0 %897
    %v899 = vadd.f32 %v792, %v794
    %900 = vadd.xlane.f32.xlu0 %v899
    %v901 = vpop.xlane.xlu0 %900
    %v902 = vadd.f32 %v796, %v798
    %903 = vadd.xlane.f32.xlu0 %v902
    %v904 = vpop.xlane.xlu0 %903
    %v905 = vadd.f32 %v800, %v802
    %906 = vadd.xlane.f32.xlu0 %v905
    %v907 = vpop.xlane.xlu0 %906
    %v908 = vadd.f32 %v804, %v806
    %909 = vadd.xlane.f32.xlu0 %v908
    %v910 = vpop.xlane.xlu0 %909
    %v911 = vadd.f32 %v808, %v810
    %912 = vadd.xlane.f32.xlu0 %v911
    %v913 = vpop.xlane.xlu0 %912
    %v914 = vadd.f32 %v812, %v814
    %915 = vadd.xlane.f32.xlu0 %v914
    %v916 = vpop.xlane.xlu0 %915
    %v917 = vadd.f32 %v816, %v818
    %918 = vadd.xlane.f32.xlu0 %v917
    %v919 = vpop.xlane.xlu0 %918
    %v920 = vadd.f32 %v820, %v822
    %921 = vadd.xlane.f32.xlu0 %v920
    %v922 = vpop.xlane.xlu0 %921
    %v923 = vadd.f32 %v824, %v826
    %924 = vadd.xlane.f32.xlu0 %v923
    %v925 = vpop.xlane.xlu0 %924
    %v926 = vadd.f32 %v828, %v830
    %927 = vadd.xlane.f32.xlu0 %v926
    %v928 = vpop.xlane.xlu0 %927
    %v929 = vadd.f32 %v832, %v834
    %930 = vadd.xlane.f32.xlu0 %v929
    %v931 = vpop.xlane.xlu0 %930
    %v932 = vadd.f32 %v836, %v838
    %933 = vadd.xlane.f32.xlu0 %v932
    %v934 = vpop.xlane.xlu0 %933
    %v935 = vrcp.pop %v841
    %v936 = vrcp.pop %v844
    %v937 = vrcp.pop %v847
    %v938 = vrcp.pop %v850
    %v939 = vrcp.pop %v853
    %v940 = vrcp.pop %v856
    %v941 = vrcp.pop %v859
    %v942 = vrcp.pop %v862
    %v943 = vrcp.pop %v865
    %v944 = vrcp.pop %v868
    %v945 = vrcp.pop %v871
    %v946 = vrcp.pop %v874
    %v947 = vrcp.pop %v877
    %v948 = vrcp.pop %v880
    %v949 = vrcp.pop %v883
    %v950 = vrcp.pop %v886
    %v951 = vrcp.pop %v889
    %v952 = vrcp.pop %v892
    %v953 = vrcp.pop %v895
    %v954 = vrcp.pop %v898
    %v955 = vrcp.pop %v901
    %v956 = vrcp.pop %v904
    %v957 = vrcp.pop %v907
    %v958 = vrcp.pop %v910
    %v959 = vrcp.pop %v913
    %v960 = vrcp.pop %v916
    %v961 = vrcp.pop %v919
    %v962 = vrcp.pop %v922
    %v963 = vrcp.pop %v925
    %v964 = vrcp.pop %v928
    %v965 = vrcp.pop %v931
    %v966 = vrcp.pop %v934
    %v967 = vmul.f32 %v712, %v935
    %v968 = vmul.f32 %v714, %v935
    %v969 = vmul.f32 %v716, %v936
    %v970 = vmul.f32 %v718, %v936
    %v971 = vmul.f32 %v720, %v937
    %v972 = vmul.f32 %v722, %v937
    %v973 = vmul.f32 %v724, %v938
    %v974 = vmul.f32 %v726, %v938
    %v975 = vmul.f32 %v728, %v939
    %v976 = vmul.f32 %v730, %v939
    %v977 = vmul.f32 %v732, %v940
    %v978 = vmul.f32 %v734, %v940
    %v979 = vmul.f32 %v736, %v941
    %v980 = vmul.f32 %v738, %v941
    %v981 = vmul.f32 %v740, %v942
    %v982 = vmul.f32 %v742, %v942
    %v983 = vmul.f32 %v744, %v943
    %v984 = vmul.f32 %v746, %v943
    %v985 = vmul.f32 %v748, %v944
    %v986 = vmul.f32 %v750, %v944
    %v987 = vmul.f32 %v752, %v945
    %v988 = vmul.f32 %v754, %v945
    %v989 = vmul.f32 %v756, %v946
    %v990 = vmul.f32 %v758, %v946
    %v991 = vmul.f32 %v760, %v947
    %v992 = vmul.f32 %v762, %v947
    %v993 = vmul.f32 %v764, %v948
    %v994 = vmul.f32 %v766, %v948
    %v995 = vmul.f32 %v768, %v949
    %v996 = vmul.f32 %v770, %v949
    %v997 = vmul.f32 %v772, %v950
    %v998 = vmul.f32 %v774, %v950
    %v999 = vmul.f32 %v776, %v951
    %v1000 = vmul.f32 %v778, %v951
    %v1001 = vmul.f32 %v780, %v952
    %v1002 = vmul.f32 %v782, %v952
    %v1003 = vmul.f32 %v784, %v953
    %v1004 = vmul.f32 %v786, %v953
    %v1005 = vmul.f32 %v788, %v954
    %v1006 = vmul.f32 %v790, %v954
    %v1007 = vmul.f32 %v792, %v955
    %v1008 = vmul.f32 %v794, %v955
    %v1009 = vmul.f32 %v796, %v956
    %v1010 = vmul.f32 %v798, %v956
    %v1011 = vmul.f32 %v800, %v957
    %v1012 = vmul.f32 %v802, %v957
    %v1013 = vmul.f32 %v804, %v958
    %v1014 = vmul.f32 %v806, %v958
    %v1015 = vmul.f32 %v808, %v959
    %v1016 = vmul.f32 %v810, %v959
    %v1017 = vmul.f32 %v812, %v960
    %v1018 = vmul.f32 %v814, %v960
    %v1019 = vmul.f32 %v816, %v961
    %v1020 = vmul.f32 %v818, %v961
    %v1021 = vmul.f32 %v820, %v962
    %v1022 = vmul.f32 %v822, %v962
    %v1023 = vmul.f32 %v824, %v963
    %v1024 = vmul.f32 %v826, %v963
    %v1025 = vmul.f32 %v828, %v964
    %v1026 = vmul.f32 %v830, %v964
    %v1027 = vmul.f32 %v832, %v965
    %v1028 = vmul.f32 %v834, %v965
    %v1029 = vmul.f32 %v836, %v966
    %v1030 = vmul.f32 %v838, %v966
    %v1031 = vpack.c.bf16 %v969, %v967
    %v1032 = vpack.c.bf16 %v970, %v968
    %v1033 = vpack.c.bf16 %v973, %v971
    %v1034 = vpack.c.bf16 %v974, %v972
    %v1035 = vpack.c.bf16 %v977, %v975
    %v1036 = vpack.c.bf16 %v978, %v976
    %v1037 = vpack.c.bf16 %v981, %v979
    %v1038 = vpack.c.bf16 %v982, %v980
    %v1039 = vpack.c.bf16 %v985, %v983
    %v1040 = vpack.c.bf16 %v986, %v984
    %v1041 = vpack.c.bf16 %v989, %v987
    %v1042 = vpack.c.bf16 %v990, %v988
    %v1043 = vpack.c.bf16 %v993, %v991
    %v1044 = vpack.c.bf16 %v994, %v992
    %v1045 = vpack.c.bf16 %v997, %v995
    %v1046 = vpack.c.bf16 %v998, %v996
    %v1047 = vpack.c.bf16 %v1001, %v999
    %v1048 = vpack.c.bf16 %v1002, %v1000
    %v1049 = vpack.c.bf16 %v1005, %v1003
    %v1050 = vpack.c.bf16 %v1006, %v1004
    %v1051 = vpack.c.bf16 %v1009, %v1007
    %v1052 = vpack.c.bf16 %v1010, %v1008
    %v1053 = vpack.c.bf16 %v1013, %v1011
    %v1054 = vpack.c.bf16 %v1014, %v1012
    %v1055 = vpack.c.bf16 %v1017, %v1015
    %v1056 = vpack.c.bf16 %v1018, %v1016
    %v1057 = vpack.c.bf16 %v1021, %v1019
    %v1058 = vpack.c.bf16 %v1022, %v1020
    %v1059 = vpack.c.bf16 %v1025, %v1023
    %v1060 = vpack.c.bf16 %v1026, %v1024
    %v1061 = vpack.c.bf16 %v1029, %v1027
    %v1062 = vpack.c.bf16 %v1030, %v1028
    %v1063 = vpack.c.bf16 %v260, %v258
    %v1064 = vpack.c.bf16 %v289, %v287
    %v1065 = vpack.c.bf16 %v265, %v263
    %v1066 = vpack.c.bf16 %v294, %v292
    %1067 = vmatpush.bf16.xpose.msra.mxu0 %v1045
    %1068 = vmatpush.bf16.xpose.msra.mxu0 %v1043
    %1069 = vmatpush.bf16.xpose.msra.mxu0 %v1041
    %1070 = vmatpush.bf16.xpose.msra.mxu0 %v1039
    %1071 = vmatpush.bf16.xpose.msra.mxu0 %v1037
    %1072 = vmatpush.bf16.xpose.msra.mxu0 %v1035
    %1073 = vmatpush.bf16.xpose.msra.mxu0 %v1033
    %1074 = vmatpush.bf16.xpose.msra.mxu0 %v1031
    %1075 = vmatmul.bf16.gmra.mxu0 %v1063
    %v1076 = vpop.f32.mrf.mxu0
    %v1077 = vadd.f32 0.0, %v1076
    %v1078 = vpop.f32.mrf.mxu0
    %v1079 = vadd.f32 0.0, %v1078
    %1080 = vmatmul.bf16.gmra.mxu0 %v1065
    %v1081 = vpop.f32.mrf.mxu0
    %v1082 = vadd.f32 0.0, %v1081
    %v1083 = vpop.f32.mrf.mxu0
    %v1084 = vadd.f32 0.0, %v1083
    %1085 = vdwg.mxu0
    %1086 = vmatpush.bf16.xpose.msra.mxu0 %v1046
    %1087 = vmatpush.bf16.xpose.msra.mxu0 %v1044
    %1088 = vmatpush.bf16.xpose.msra.mxu0 %v1042
    %1089 = vmatpush.bf16.xpose.msra.mxu0 %v1040
    %1090 = vmatpush.bf16.xpose.msra.mxu0 %v1038
    %1091 = vmatpush.bf16.xpose.msra.mxu0 %v1036
    %1092 = vmatpush.bf16.xpose.msra.mxu0 %v1034
    %1093 = vmatpush.bf16.xpose.msra.mxu0 %v1032
    %1094 = vmatmul.bf16.gmra.mxu0 %v1064
    %v1095 = vpop.f32.mrf.mxu0
    %v1096 = vadd.f32 %v1077, %v1095
    %v1097 = vpop.f32.mrf.mxu0
    %v1098 = vadd.f32 %v1079, %v1097
    %1099 = vmatmul.bf16.gmra.mxu0 %v1066
    %v1100 = vpop.f32.mrf.mxu0
    %v1101 = vadd.f32 %v1082, %v1100
    %v1102 = vpop.f32.mrf.mxu0
    %v1103 = vadd.f32 %v1084, %v1102
    %1104 = vdwg.mxu0
    %1105 = vmatpush.bf16.xpose.msra.mxu0 %v1061
    %1106 = vmatpush.bf16.xpose.msra.mxu0 %v1059
    %1107 = vmatpush.bf16.xpose.msra.mxu0 %v1057
    %1108 = vmatpush.bf16.xpose.msra.mxu0 %v1055
    %1109 = vmatpush.bf16.xpose.msra.mxu0 %v1053
    %1110 = vmatpush.bf16.xpose.msra.mxu0 %v1051
    %1111 = vmatpush.bf16.xpose.msra.mxu0 %v1049
    %1112 = vmatpush.bf16.xpose.msra.mxu0 %v1047
    %1113 = vmatmul.bf16.gmra.mxu0 %v1063
    %v1114 = vpop.f32.mrf.mxu0
    %v1115 = vadd.f32 0.0, %v1114
    %v1116 = vpop.f32.mrf.mxu0
    %v1117 = vadd.f32 0.0, %v1116
    %1118 = vmatmul.bf16.gmra.mxu0 %v1065
    %v1119 = vpop.f32.mrf.mxu0
    %v1120 = vadd.f32 0.0, %v1119
    %v1121 = vpop.f32.mrf.mxu0
    %v1122 = vadd.f32 0.0, %v1121
    %1123 = vdwg.mxu0
    %1124 = vmatpush.bf16.xpose.msra.mxu0 %v1062
    %1125 = vmatpush.bf16.xpose.msra.mxu0 %v1060
    %1126 = vmatpush.bf16.xpose.msra.mxu0 %v1058
    %1127 = vmatpush.bf16.xpose.msra.mxu0 %v1056
    %1128 = vmatpush.bf16.xpose.msra.mxu0 %v1054
    %1129 = vmatpush.bf16.xpose.msra.mxu0 %v1052
    %1130 = vmatpush.bf16.xpose.msra.mxu0 %v1050
    %1131 = vmatpush.bf16.xpose.msra.mxu0 %v1048
    %1132 = vmatmul.bf16.gmra.mxu0 %v1064
    %v1133 = vpop.f32.mrf.mxu0
    %v1134 = vadd.f32 %v1115, %v1133
    %v1135 = vpop.f32.mrf.mxu0
    %v1136 = vadd.f32 %v1117, %v1135
    %1137 = vmatmul.bf16.gmra.mxu0 %v1066
    %v1138 = vpop.f32.mrf.mxu0
    %v1139 = vadd.f32 %v1120, %v1138
    %v1140 = vpop.f32.mrf.mxu0
    %v1141 = vadd.f32 %v1122, %v1140
    %1142 = vdwg.mxu0
    %v1143 = vmax.f32 %v1096, 0.0
    %v1144 = vmax.f32 %v1134, 0.0
    %v1145 = vmax.f32 %v1098, 0.0
    %v1146 = vmax.f32 %v1136, 0.0
    %v1147 = vmax.f32 %v1101, 0.0
    %v1148 = vmax.f32 %v1139, 0.0
    %v1149 = vmax.f32 %v1103, 0.0
    %v1150 = vmax.f32 %v1141, 0.0
    %v1151 = vmax.f32 %v78, 0.0
    %v1152 = vmax.f32 %v79, 0.0
    %v1153 = vmax.f32 %v80, 0.0
    %v1154 = vmax.f32 %v81, 0.0
    %v1155 = vmax.f32 %v82, 0.0
    %v1156 = vmax.f32 %v83, 0.0
    %v1157 = vmax.f32 %v84, 0.0
    %v1158 = vmax.f32 %v85, 0.0
    %v1159 = vpack.c.bf16 %v1145, %v1143
    %v1160 = vpack.c.bf16 %v1146, %v1144
    %v1161 = vpack.c.bf16 %v1149, %v1147
    %v1162 = vpack.c.bf16 %v1150, %v1148
    %v1163 = vpack.c.bf16 %v1153, %v1151
    %v1164 = vpack.c.bf16 %v1154, %v1152
    %v1165 = vpack.c.bf16 %v1157, %v1155
    %v1166 = vpack.c.bf16 %v1158, %v1156
    %1168 = vset.pattern.permute.xlu0 0
    %1169 = vperm.xlu0 %1168, %v62
    %v1170 = vpop.permute.xlu0 %1169
    %1173 = vset.pattern.permute.xlu0 0
    %1174 = vperm.xlu0 %1173, %v63
    %v1175 = vpop.permute.xlu0 %1174
    %1178 = vset.pattern.permute.xlu0 0
    %1179 = vperm.xlu0 %1178, %v64
    %v1180 = vpop.permute.xlu0 %1179
    %1183 = vset.pattern.permute.xlu0 0
    %1184 = vperm.xlu0 %1183, %v65
    %v1185 = vpop.permute.xlu0 %1184
    %1188 = vset.pattern.permute.xlu0 0
    %1189 = vperm.xlu0 %1188, %v66
    %v1190 = vpop.permute.xlu0 %1189
    %1193 = vset.pattern.permute.xlu0 0
    %1194 = vperm.xlu0 %1193, %v67
    %v1195 = vpop.permute.xlu0 %1194
    %1198 = vset.pattern.permute.xlu0 0
    %1199 = vperm.xlu0 %1198, %v68
    %v1200 = vpop.permute.xlu0 %1199
    %1203 = vset.pattern.permute.xlu0 0
    %1204 = vperm.xlu0 %1203, %v69
    %v1205 = vpop.permute.xlu0 %1204
    %v1215 = vunpack.c.l.b16 %v54
    %v1216 = vunpack.c.l.b16 %v55
    %v1217 = vunpack.c.l.b16 %v56
    %v1218 = vunpack.c.l.b16 %v57
    %v1219 = vunpack.c.l.b16 %v58
    %v1220 = vunpack.c.l.b16 %v59
    %v1221 = vunpack.c.l.b16 %v60
    %v1222 = vunpack.c.l.b16 %v61
    %v1223 = vpack.c.b16 %v1216, %v1215
    %v1224 = vpack.c.b16 %v1218, %v1217
    %v1225 = vpack.c.b16 %v1220, %v1219
    %v1226 = vpack.c.b16 %v1222, %v1221
    %vm1227 = vcmask 523264
    %v1229 = vsel %vm1227, %v1223, 0
    %v1232 = vsel %vm1227, %v1224, 0
    %v1235 = vsel %vm1227, %v1225, 0
    %v1238 = vsel %vm1227, %v1226, 0
    %1240 = vmatpush.bf16.msra.mxu0 0
    %1241 = vmatpush.bf16.msra.mxu0 0
    %1242 = vmatpush.bf16.msra.mxu0 0
    %1243 = vmatpush.bf16.msra.mxu0 0
    %1244 = vmatpush.bf16.msra.mxu0 %v1165
    %1245 = vmatpush.bf16.msra.mxu0 %v1163
    %1246 = vmatpush.bf16.msra.mxu0 %v1161
    %1247 = vmatpush.bf16.msra.mxu0 %v1159
    %1248 = vmatmul.bf16.gmra.mxu0 %v1229
    %v1249 = vpop.f32.mrf.mxu0
    %v1250 = vadd.f32 %v1170, %v1249
    %v1251 = vpop.f32.mrf.mxu0
    %v1252 = vadd.f32 %v1175, %v1251
    %1253 = vmatmul.bf16.gmra.mxu0 %v1232
    %v1254 = vpop.f32.mrf.mxu0
    %v1255 = vadd.f32 %v1180, %v1254
    %v1256 = vpop.f32.mrf.mxu0
    %v1257 = vadd.f32 %v1185, %v1256
    %1258 = vmatmul.bf16.gmra.mxu0 %v1235
    %v1259 = vpop.f32.mrf.mxu0
    %v1260 = vadd.f32 %v1190, %v1259
    %v1261 = vpop.f32.mrf.mxu0
    %v1262 = vadd.f32 %v1195, %v1261
    %1263 = vmatmul.bf16.gmra.mxu0 %v1238
    %v1264 = vpop.f32.mrf.mxu0
    %v1265 = vadd.f32 %v1200, %v1264
    %v1266 = vpop.f32.mrf.mxu0
    %v1267 = vadd.f32 %v1205, %v1266
    %1268 = vdwg.mxu0
    %1269 = vmatpush.bf16.msra.mxu0 0
    %1270 = vmatpush.bf16.msra.mxu0 0
    %1271 = vmatpush.bf16.msra.mxu0 0
    %1272 = vmatpush.bf16.msra.mxu0 0
    %1273 = vmatpush.bf16.msra.mxu0 %v1166
    %1274 = vmatpush.bf16.msra.mxu0 %v1164
    %1275 = vmatpush.bf16.msra.mxu0 %v1162
    %1276 = vmatpush.bf16.msra.mxu0 %v1160
    %1277 = vmatmul.bf16.gmra.mxu0 %v1229
    %v1278 = vpop.f32.mrf.mxu0
    %v1279 = vadd.f32 %v1170, %v1278
    %v1280 = vpop.f32.mrf.mxu0
    %v1281 = vadd.f32 %v1175, %v1280
    %1282 = vmatmul.bf16.gmra.mxu0 %v1232
    %v1283 = vpop.f32.mrf.mxu0
    %v1284 = vadd.f32 %v1180, %v1283
    %v1285 = vpop.f32.mrf.mxu0
    %v1286 = vadd.f32 %v1185, %v1285
    %1287 = vmatmul.bf16.gmra.mxu0 %v1235
    %v1288 = vpop.f32.mrf.mxu0
    %v1289 = vadd.f32 %v1190, %v1288
    %v1290 = vpop.f32.mrf.mxu0
    %v1291 = vadd.f32 %v1195, %v1290
    %1292 = vmatmul.bf16.gmra.mxu0 %v1238
    %v1293 = vpop.f32.mrf.mxu0
    %v1294 = vadd.f32 %v1200, %v1293
    %v1295 = vpop.f32.mrf.mxu0
    %v1296 = vadd.f32 %v1205, %v1295
    %1297 = vdwg.mxu0
    %1298 = vst [vmem:[#allocation5] sm:$0xff] %v1250
    %1299 = vst [vmem:[#allocation5 + $0x8] sm:$0xff] %v1279
    %1300 = vst [vmem:[#allocation5 + $0x10] sm:$0xff] %v1252
    %1301 = vst [vmem:[#allocation5 + $0x18] sm:$0xff] %v1281
    %1302 = vst [vmem:[#allocation5 + $0x20] sm:$0xff] %v1255
    %1303 = vst [vmem:[#allocation5 + $0x28] sm:$0xff] %v1284
    %1304 = vst [vmem:[#allocation5 + $0x30] sm:$0xff] %v1257
    %1305 = vst [vmem:[#allocation5 + $0x38] sm:$0xff] %v1286
    %1306 = vst [vmem:[#allocation5 + $0x40] sm:$0xff] %v1260
    %1307 = vst [vmem:[#allocation5 + $0x48] sm:$0xff] %v1289
    %1308 = vst [vmem:[#allocation5 + $0x50] sm:$0xff] %v1262
    %1309 = vst [vmem:[#allocation5 + $0x58] sm:$0xff] %v1291
    %1310 = vst [vmem:[#allocation5 + $0x60] sm:$0xff] %v1265
    %1311 = vst [vmem:[#allocation5 + $0x68] sm:$0xff] %v1294
    %1312 = vst [vmem:[#allocation5 + $0x70] sm:$0xff] %v1267
    %1313 = vst [vmem:[#allocation5 + $0x78] sm:$0xff] %v1296
    %s1314 = scalar_lea.vmem [#allocation2], 128
    %v1315 = vld [vmem:[%s1314] sm:$0xff]
    %v1316 = vld [vmem:[%s1314 + $0x8] sm:$0xff]
    %v1317 = vld [vmem:[%s1314 + $0x10] sm:$0xff]
    %v1318 = vld [vmem:[%s1314 + $0x18] sm:$0xff]
    %v1319 = vld [vmem:[%s1314 + $0x20] sm:$0xff]
    %v1320 = vld [vmem:[%s1314 + $0x28] sm:$0xff]
    %v1321 = vld [vmem:[%s1314 + $0x30] sm:$0xff]
    %v1322 = vld [vmem:[%s1314 + $0x38] sm:$0xff]
    %v1323 = vld [vmem:[%s1314 + $0x40] sm:$0xff]
    %v1324 = vld [vmem:[%s1314 + $0x48] sm:$0xff]
    %v1325 = vld [vmem:[%s1314 + $0x50] sm:$0xff]
    %v1326 = vld [vmem:[%s1314 + $0x58] sm:$0xff]
    %v1327 = vld [vmem:[%s1314 + $0x60] sm:$0xff]
    %v1328 = vld [vmem:[%s1314 + $0x68] sm:$0xff]
    %v1329 = vld [vmem:[%s1314 + $0x70] sm:$0xff]
    %v1330 = vld [vmem:[%s1314 + $0x78] sm:$0xff]
    %v1331 = vadd.f32 %v1315, %v1316
    %v1332 = vadd.f32 %v1331, %v1317
    %v1333 = vadd.f32 %v1332, %v1318
    %v1334 = vadd.f32 %v1333, %v1319
    %v1335 = vadd.f32 %v1334, %v1320
    %v1336 = vadd.f32 %v1335, %v1321
    %v1337 = vadd.f32 %v1336, %v1322
    %1338 = vadd.xlane.f32.xlu0 %v1337
    %v1339 = vpop.xlane.xlu0 %1338
    %v1340 = vrot.slane %v1339, 4
    %v1341 = vadd.f32 %v1339, %v1340
    %v1342 = vrot.slane %v1341, 2
    %v1343 = vadd.f32 %v1341, %v1342
    %v1344 = vrot.slane %v1343, 1
    %v1345 = vadd.f32 %v1343, %v1344
    %s1346 = vtos %v1345
    %s1347 = smul.f32 %s1346, 0.00012207031
    %v1348 = vmul.f32 %v1315, %v1315
    %v1349 = vmul.f32 %v1316, %v1316
    %v1350 = vmul.f32 %v1317, %v1317
    %v1351 = vmul.f32 %v1318, %v1318
    %v1352 = vmul.f32 %v1319, %v1319
    %v1353 = vmul.f32 %v1320, %v1320
    %v1354 = vmul.f32 %v1321, %v1321
    %v1355 = vmul.f32 %v1322, %v1322
    %v1356 = vadd.f32 %v1348, %v1349
    %v1357 = vadd.f32 %v1356, %v1350
    %v1358 = vadd.f32 %v1357, %v1351
    %v1359 = vadd.f32 %v1358, %v1352
    %v1360 = vadd.f32 %v1359, %v1353
    %v1361 = vadd.f32 %v1360, %v1354
    %v1362 = vadd.f32 %v1361, %v1355
    %1363 = vadd.xlane.f32.xlu0 %v1362
    %v1364 = vpop.xlane.xlu0 %1363
    %v1365 = vrot.slane %v1364, 4
    %v1366 = vadd.f32 %v1364, %v1365
    %v1367 = vrot.slane %v1366, 2
    %v1368 = vadd.f32 %v1366, %v1367
    %v1369 = vrot.slane %v1368, 1
    %v1370 = vadd.f32 %v1368, %v1369
    %s1371 = vtos %v1370
    %s1372 = smul.f32 %s1371, 0.00012207031
    %s1373 = smul.f32 %s1347, %s1347
    %s1374 = ssub.f32 %s1372, %s1373
    %v1375 = vstv %s1347
    %v1376 = vsub.f32 %v1315, %v1375
    %v1377 = vsub.f32 %v1316, %v1375
    %v1378 = vsub.f32 %v1317, %v1375
    %v1379 = vsub.f32 %v1318, %v1375
    %v1380 = vsub.f32 %v1319, %v1375
    %v1381 = vsub.f32 %v1320, %v1375
    %v1382 = vsub.f32 %v1321, %v1375
    %v1383 = vsub.f32 %v1322, %v1375
    %s1384 = sadd.f32 %s1374, 1e-05
    %v1385 = vstv %s1384
    %v1386 = vrsqrt.pop %v1385
    %v1387 = vmul.f32 %v1386, %v1385
    %v1388 = vmul.f32 %v1387, %v1386
    %v1389 = vmul.f32 0.5, %v1388
    %v1390 = vsub.f32 1.5, %v1389
    %v1391 = vmul.f32 %v1386, %v1390
    %vm1392 = vweird.f32 %v1385
    %vm1393 = vweird.f32 %v1386
    %vm1394 = vmor %vm1392, %vm1393
    %v1395 = vsel %vm1394, %v1386, %v1391
    %s1396 = vtos %v1395
    %v1397 = vstv %s1396
    %v1398 = vmul.f32 %v1376, %v1397
    %v1399 = vmul.f32 %v1377, %v1397
    %v1400 = vmul.f32 %v1378, %v1397
    %v1401 = vmul.f32 %v1379, %v1397
    %v1402 = vmul.f32 %v1380, %v1397
    %v1403 = vmul.f32 %v1381, %v1397
    %v1404 = vmul.f32 %v1382, %v1397
    %v1405 = vmul.f32 %v1383, %v1397
    %v1406 = vpack.c.bf16 %v1400, %v1398
    %v1407 = vpack.c.bf16 %v1401, %v1399
    %v1408 = vpack.c.bf16 %v1404, %v1402
    %v1409 = vpack.c.bf16 %v1405, %v1403
    %1410 = vmatpush.bf16.msra.mxu0 0
    %1411 = vmatpush.bf16.msra.mxu0 0
    %1412 = vmatpush.bf16.msra.mxu0 0
    %1413 = vmatpush.bf16.msra.mxu0 0
    %1414 = vmatpush.bf16.msra.mxu0 0
    %1415 = vmatpush.bf16.msra.mxu0 0
    %1416 = vmatpush.bf16.msra.mxu0 %v1408
    %1417 = vmatpush.bf16.msra.mxu0 %v1406
    %1418 = vmatmul.bf16.gmra.mxu0 %v227
    %v1419 = vpop.f32.mrf.mxu0
    %v1420 = vadd.f32 %v168, %v1419
    %v1421 = vpop.f32.mrf.mxu0
    %v1422 = vadd.f32 %v173, %v1421
    %1423 = vmatmul.bf16.gmra.mxu0 %v230
    %v1424 = vpop.f32.mrf.mxu0
    %v1425 = vadd.f32 %v178, %v1424
    %v1426 = vpop.f32.mrf.mxu0
    %v1427 = vadd.f32 %v183, %v1426
    %1428 = vmatmul.bf16.gmra.mxu0 %v233
    %v1429 = vpop.f32.mrf.mxu0
    %v1430 = vadd.f32 %v188, %v1429
    %v1431 = vpop.f32.mrf.mxu0
    %v1432 = vadd.f32 %v193, %v1431
    %1433 = vmatmul.bf16.gmra.mxu0 %v236
    %v1434 = vpop.f32.mrf.mxu0
    %v1435 = vadd.f32 %v198, %v1434
    %v1436 = vpop.f32.mrf.mxu0
    %v1437 = vadd.f32 %v203, %v1436
    %1438 = vdwg.mxu0
    %1439 = vmatpush.bf16.msra.mxu0 0
    %1440 = vmatpush.bf16.msra.mxu0 0
    %1441 = vmatpush.bf16.msra.mxu0 0
    %1442 = vmatpush.bf16.msra.mxu0 0
    %1443 = vmatpush.bf16.msra.mxu0 0
    %1444 = vmatpush.bf16.msra.mxu0 0
    %1445 = vmatpush.bf16.msra.mxu0 %v1409
    %1446 = vmatpush.bf16.msra.mxu0 %v1407
    %1447 = vmatmul.bf16.gmra.mxu0 %v227
    %v1448 = vpop.f32.mrf.mxu0
    %v1449 = vadd.f32 %v168, %v1448
    %v1450 = vpop.f32.mrf.mxu0
    %v1451 = vadd.f32 %v173, %v1450
    %1452 = vmatmul.bf16.gmra.mxu0 %v230
    %v1453 = vpop.f32.mrf.mxu0
    %v1454 = vadd.f32 %v178, %v1453
    %v1455 = vpop.f32.mrf.mxu0
    %v1456 = vadd.f32 %v183, %v1455
    %1457 = vmatmul.bf16.gmra.mxu0 %v233
    %v1458 = vpop.f32.mrf.mxu0
    %v1459 = vadd.f32 %v188, %v1458
    %v1460 = vpop.f32.mrf.mxu0
    %v1461 = vadd.f32 %v193, %v1460
    %1462 = vmatmul.bf16.gmra.mxu0 %v236
    %v1463 = vpop.f32.mrf.mxu0
    %v1464 = vadd.f32 %v198, %v1463
    %v1465 = vpop.f32.mrf.mxu0
    %v1466 = vadd.f32 %v203, %v1465
    %1467 = vdwg.mxu0
    %v1468 = vpack.c.bf16 %v1422, %v1420
    %v1469 = vpack.c.bf16 %v1451, %v1449
    %v1470 = vpack.c.bf16 %v1427, %v1425
    %v1471 = vpack.c.bf16 %v1456, %v1454
    %1472 = vxpose.binary.xlu0.c.b16.start [1/16] %v1469, %v1468, 128
    %1473 = vxpose.binary.xlu0.c.b16.cont [2/16] 0, 0, 128
    %1474 = vxpose.binary.xlu0.c.b16.cont [3/16] 0, 0, 128
    %1475 = vxpose.binary.xlu0.c.b16.cont [4/16] 0, 0, 128
    %1476 = vxpose.binary.xlu0.c.b16.cont [5/16] 0, 0, 128
    %1477 = vxpose.binary.xlu0.c.b16.cont [6/16] 0, 0, 128
    %1478 = vxpose.binary.xlu0.c.b16.cont [7/16] 0, 0, 128
    %1479 = vxpose.binary.xlu0.c.b16.end [8/16] 0, 0, 128
    %v1480 = vpop.trf.xlu0
    %v1481 = vpop.trf.xlu0
    %v1482 = vpop.trf.xlu0
    %v1483 = vpop.trf.xlu0
    %v1484 = vpop.trf.xlu0
    %v1485 = vpop.trf.xlu0
    %v1486 = vpop.trf.xlu0
    %v1487 = vpop.trf.xlu0
    %v1488 = vpop.trf.xlu0
    %v1489 = vpop.trf.xlu0
    %v1490 = vpop.trf.xlu0
    %v1491 = vpop.trf.xlu0
    %v1492 = vpop.trf.xlu0
    %v1493 = vpop.trf.xlu0
    %v1494 = vpop.trf.xlu0
    %v1495 = vpop.trf.xlu0
    %v1497 = vsel %vm324, %v1480, 0
    %v1500 = vsel %vm324, %v1482, 0
    %v1503 = vsel %vm324, %v1484, 0
    %v1506 = vsel %vm324, %v1486, 0
    %v1509 = vsel %vm324, %v1488, 0
    %v1512 = vsel %vm324, %v1490, 0
    %v1515 = vsel %vm324, %v1492, 0
    %v1518 = vsel %vm324, %v1494, 0
    %v1521 = vsel %vm324, %v1481, 0
    %v1524 = vsel %vm324, %v1483, 0
    %v1527 = vsel %vm324, %v1485, 0
    %v1530 = vsel %vm324, %v1487, 0
    %v1533 = vsel %vm324, %v1489, 0
    %v1536 = vsel %vm324, %v1491, 0
    %v1539 = vsel %vm324, %v1493, 0
    %v1542 = vsel %vm324, %v1495, 0
    %1544 = vmatpush.bf16.msra.mxu0 0
    %1545 = vmatpush.bf16.msra.mxu0 0
    %1546 = vmatpush.bf16.msra.mxu0 0
    %1547 = vmatpush.bf16.msra.mxu0 0
    %1548 = vmatpush.bf16.msra.mxu0 0
    %1549 = vmatpush.bf16.msra.mxu0 0
    %1550 = vmatpush.bf16.msra.mxu0 0
    %1551 = vmatpush.bf16.msra.mxu0 %v1470
    %1552 = vmatmul.bf16.gmra.mxu0 %v1497
    %v1553 = vpop.f32.mrf.mxu0
    %v1554 = vadd.f32 0.0, %v1553
    %v1555 = vpop.f32.mrf.mxu0
    %v1556 = vadd.f32 0.0, %v1555
    %1557 = vmatmul.bf16.gmra.mxu0 %v1500
    %v1558 = vpop.f32.mrf.mxu0
    %v1559 = vadd.f32 0.0, %v1558
    %v1560 = vpop.f32.mrf.mxu0
    %v1561 = vadd.f32 0.0, %v1560
    %1562 = vmatmul.bf16.gmra.mxu0 %v1503
    %v1563 = vpop.f32.mrf.mxu0
    %v1564 = vadd.f32 0.0, %v1563
    %v1565 = vpop.f32.mrf.mxu0
    %v1566 = vadd.f32 0.0, %v1565
    %1567 = vmatmul.bf16.gmra.mxu0 %v1506
    %v1568 = vpop.f32.mrf.mxu0
    %v1569 = vadd.f32 0.0, %v1568
    %v1570 = vpop.f32.mrf.mxu0
    %v1571 = vadd.f32 0.0, %v1570
    %1572 = vmatmul.bf16.gmra.mxu0 %v1509
    %v1573 = vpop.f32.mrf.mxu0
    %v1574 = vadd.f32 0.0, %v1573
    %v1575 = vpop.f32.mrf.mxu0
    %v1576 = vadd.f32 0.0, %v1575
    %1577 = vmatmul.bf16.gmra.mxu0 %v1512
    %v1578 = vpop.f32.mrf.mxu0
    %v1579 = vadd.f32 0.0, %v1578
    %v1580 = vpop.f32.mrf.mxu0
    %v1581 = vadd.f32 0.0, %v1580
    %1582 = vmatmul.bf16.gmra.mxu0 %v1515
    %v1583 = vpop.f32.mrf.mxu0
    %v1584 = vadd.f32 0.0, %v1583
    %v1585 = vpop.f32.mrf.mxu0
    %v1586 = vadd.f32 0.0, %v1585
    %1587 = vmatmul.bf16.gmra.mxu0 %v1518
    %v1588 = vpop.f32.mrf.mxu0
    %v1589 = vadd.f32 0.0, %v1588
    %v1590 = vpop.f32.mrf.mxu0
    %v1591 = vadd.f32 0.0, %v1590
    %1592 = vmatmul.bf16.gmra.mxu0 %v1521
    %v1593 = vpop.f32.mrf.mxu0
    %v1594 = vadd.f32 0.0, %v1593
    %v1595 = vpop.f32.mrf.mxu0
    %v1596 = vadd.f32 0.0, %v1595
    %1597 = vmatmul.bf16.gmra.mxu0 %v1524
    %v1598 = vpop.f32.mrf.mxu0
    %v1599 = vadd.f32 0.0, %v1598
    %v1600 = vpop.f32.mrf.mxu0
    %v1601 = vadd.f32 0.0, %v1600
    %1602 = vmatmul.bf16.gmra.mxu0 %v1527
    %v1603 = vpop.f32.mrf.mxu0
    %v1604 = vadd.f32 0.0, %v1603
    %v1605 = vpop.f32.mrf.mxu0
    %v1606 = vadd.f32 0.0, %v1605
    %1607 = vmatmul.bf16.gmra.mxu0 %v1530
    %v1608 = vpop.f32.mrf.mxu0
    %v1609 = vadd.f32 0.0, %v1608
    %v1610 = vpop.f32.mrf.mxu0
    %v1611 = vadd.f32 0.0, %v1610
    %1612 = vmatmul.bf16.gmra.mxu0 %v1533
    %v1613 = vpop.f32.mrf.mxu0
    %v1614 = vadd.f32 0.0, %v1613
    %v1615 = vpop.f32.mrf.mxu0
    %v1616 = vadd.f32 0.0, %v1615
    %1617 = vmatmul.bf16.gmra.mxu0 %v1536
    %v1618 = vpop.f32.mrf.mxu0
    %v1619 = vadd.f32 0.0, %v1618
    %v1620 = vpop.f32.mrf.mxu0
    %v1621 = vadd.f32 0.0, %v1620
    %1622 = vmatmul.bf16.gmra.mxu0 %v1539
    %v1623 = vpop.f32.mrf.mxu0
    %v1624 = vadd.f32 0.0, %v1623
    %v1625 = vpop.f32.mrf.mxu0
    %v1626 = vadd.f32 0.0, %v1625
    %1627 = vmatmul.bf16.gmra.mxu0 %v1542
    %v1628 = vpop.f32.mrf.mxu0
    %v1629 = vadd.f32 0.0, %v1628
    %v1630 = vpop.f32.mrf.mxu0
    %v1631 = vadd.f32 0.0, %v1630
    %1632 = vdwg.mxu0
    %1633 = vmatpush.bf16.msra.mxu0 0
    %1634 = vmatpush.bf16.msra.mxu0 0
    %1635 = vmatpush.bf16.msra.mxu0 0
    %1636 = vmatpush.bf16.msra.mxu0 0
    %1637 = vmatpush.bf16.msra.mxu0 0
    %1638 = vmatpush.bf16.msra.mxu0 0
    %1639 = vmatpush.bf16.msra.mxu0 0
    %1640 = vmatpush.bf16.msra.mxu0 %v1471
    %1641 = vmatmul.bf16.gmra.mxu0 %v1497
    %v1642 = vpop.f32.mrf.mxu0
    %v1643 = vadd.f32 0.0, %v1642
    %v1644 = vpop.f32.mrf.mxu0
    %v1645 = vadd.f32 0.0, %v1644
    %1646 = vmatmul.bf16.gmra.mxu0 %v1500
    %v1647 = vpop.f32.mrf.mxu0
    %v1648 = vadd.f32 0.0, %v1647
    %v1649 = vpop.f32.mrf.mxu0
    %v1650 = vadd.f32 0.0, %v1649
    %1651 = vmatmul.bf16.gmra.mxu0 %v1503
    %v1652 = vpop.f32.mrf.mxu0
    %v1653 = vadd.f32 0.0, %v1652
    %v1654 = vpop.f32.mrf.mxu0
    %v1655 = vadd.f32 0.0, %v1654
    %1656 = vmatmul.bf16.gmra.mxu0 %v1506
    %v1657 = vpop.f32.mrf.mxu0
    %v1658 = vadd.f32 0.0, %v1657
    %v1659 = vpop.f32.mrf.mxu0
    %v1660 = vadd.f32 0.0, %v1659
    %1661 = vmatmul.bf16.gmra.mxu0 %v1509
    %v1662 = vpop.f32.mrf.mxu0
    %v1663 = vadd.f32 0.0, %v1662
    %v1664 = vpop.f32.mrf.mxu0
    %v1665 = vadd.f32 0.0, %v1664
    %1666 = vmatmul.bf16.gmra.mxu0 %v1512
    %v1667 = vpop.f32.mrf.mxu0
    %v1668 = vadd.f32 0.0, %v1667
    %v1669 = vpop.f32.mrf.mxu0
    %v1670 = vadd.f32 0.0, %v1669
    %1671 = vmatmul.bf16.gmra.mxu0 %v1515
    %v1672 = vpop.f32.mrf.mxu0
    %v1673 = vadd.f32 0.0, %v1672
    %v1674 = vpop.f32.mrf.mxu0
    %v1675 = vadd.f32 0.0, %v1674
    %1676 = vmatmul.bf16.gmra.mxu0 %v1518
    %v1677 = vpop.f32.mrf.mxu0
    %v1678 = vadd.f32 0.0, %v1677
    %v1679 = vpop.f32.mrf.mxu0
    %v1680 = vadd.f32 0.0, %v1679
    %1681 = vmatmul.bf16.gmra.mxu0 %v1521
    %v1682 = vpop.f32.mrf.mxu0
    %v1683 = vadd.f32 0.0, %v1682
    %v1684 = vpop.f32.mrf.mxu0
    %v1685 = vadd.f32 0.0, %v1684
    %1686 = vmatmul.bf16.gmra.mxu0 %v1524
    %v1687 = vpop.f32.mrf.mxu0
    %v1688 = vadd.f32 0.0, %v1687
    %v1689 = vpop.f32.mrf.mxu0
    %v1690 = vadd.f32 0.0, %v1689
    %1691 = vmatmul.bf16.gmra.mxu0 %v1527
    %v1692 = vpop.f32.mrf.mxu0
    %v1693 = vadd.f32 0.0, %v1692
    %v1694 = vpop.f32.mrf.mxu0
    %v1695 = vadd.f32 0.0, %v1694
    %1696 = vmatmul.bf16.gmra.mxu0 %v1530
    %v1697 = vpop.f32.mrf.mxu0
    %v1698 = vadd.f32 0.0, %v1697
    %v1699 = vpop.f32.mrf.mxu0
    %v1700 = vadd.f32 0.0, %v1699
    %1701 = vmatmul.bf16.gmra.mxu0 %v1533
    %v1702 = vpop.f32.mrf.mxu0
    %v1703 = vadd.f32 0.0, %v1702
    %v1704 = vpop.f32.mrf.mxu0
    %v1705 = vadd.f32 0.0, %v1704
    %1706 = vmatmul.bf16.gmra.mxu0 %v1536
    %v1707 = vpop.f32.mrf.mxu0
    %v1708 = vadd.f32 0.0, %v1707
    %v1709 = vpop.f32.mrf.mxu0
    %v1710 = vadd.f32 0.0, %v1709
    %1711 = vmatmul.bf16.gmra.mxu0 %v1539
    %v1712 = vpop.f32.mrf.mxu0
    %v1713 = vadd.f32 0.0, %v1712
    %v1714 = vpop.f32.mrf.mxu0
    %v1715 = vadd.f32 0.0, %v1714
    %1716 = vmatmul.bf16.gmra.mxu0 %v1542
    %v1717 = vpop.f32.mrf.mxu0
    %v1718 = vadd.f32 0.0, %v1717
    %v1719 = vpop.f32.mrf.mxu0
    %v1720 = vadd.f32 0.0, %v1719
    %1721 = vdwg.mxu0
    %v1722 = vmax.f32 %v1554, %v1643
    %1723 = vmax.xlane.f32.xlu0 %v1722
    %v1724 = vpop.xlane.xlu0 %1723
    %v1725 = vmax.f32 %v1556, %v1645
    %1726 = vmax.xlane.f32.xlu0 %v1725
    %v1727 = vpop.xlane.xlu0 %1726
    %v1728 = vmax.f32 %v1559, %v1648
    %1729 = vmax.xlane.f32.xlu0 %v1728
    %v1730 = vpop.xlane.xlu0 %1729
    %v1731 = vmax.f32 %v1561, %v1650
    %1732 = vmax.xlane.f32.xlu0 %v1731
    %v1733 = vpop.xlane.xlu0 %1732
    %v1734 = vmax.f32 %v1564, %v1653
    %1735 = vmax.xlane.f32.xlu0 %v1734
    %v1736 = vpop.xlane.xlu0 %1735
    %v1737 = vmax.f32 %v1566, %v1655
    %1738 = vmax.xlane.f32.xlu0 %v1737
    %v1739 = vpop.xlane.xlu0 %1738
    %v1740 = vmax.f32 %v1569, %v1658
    %1741 = vmax.xlane.f32.xlu0 %v1740
    %v1742 = vpop.xlane.xlu0 %1741
    %v1743 = vmax.f32 %v1571, %v1660
    %1744 = vmax.xlane.f32.xlu0 %v1743
    %v1745 = vpop.xlane.xlu0 %1744
    %v1746 = vmax.f32 %v1574, %v1663
    %1747 = vmax.xlane.f32.xlu0 %v1746
    %v1748 = vpop.xlane.xlu0 %1747
    %v1749 = vmax.f32 %v1576, %v1665
    %1750 = vmax.xlane.f32.xlu0 %v1749
    %v1751 = vpop.xlane.xlu0 %1750
    %v1752 = vmax.f32 %v1579, %v1668
    %1753 = vmax.xlane.f32.xlu0 %v1752
    %v1754 = vpop.xlane.xlu0 %1753
    %v1755 = vmax.f32 %v1581, %v1670
    %1756 = vmax.xlane.f32.xlu0 %v1755
    %v1757 = vpop.xlane.xlu0 %1756
    %v1758 = vmax.f32 %v1584, %v1673
    %1759 = vmax.xlane.f32.xlu0 %v1758
    %v1760 = vpop.xlane.xlu0 %1759
    %v1761 = vmax.f32 %v1586, %v1675
    %1762 = vmax.xlane.f32.xlu0 %v1761
    %v1763 = vpop.xlane.xlu0 %1762
    %v1764 = vmax.f32 %v1589, %v1678
    %1765 = vmax.xlane.f32.xlu0 %v1764
    %v1766 = vpop.xlane.xlu0 %1765
    %v1767 = vmax.f32 %v1591, %v1680
    %1768 = vmax.xlane.f32.xlu0 %v1767
    %v1769 = vpop.xlane.xlu0 %1768
    %v1770 = vmax.f32 %v1594, %v1683
    %1771 = vmax.xlane.f32.xlu0 %v1770
    %v1772 = vpop.xlane.xlu0 %1771
    %v1773 = vmax.f32 %v1596, %v1685
    %1774 = vmax.xlane.f32.xlu0 %v1773
    %v1775 = vpop.xlane.xlu0 %1774
    %v1776 = vmax.f32 %v1599, %v1688
    %1777 = vmax.xlane.f32.xlu0 %v1776
    %v1778 = vpop.xlane.xlu0 %1777
    %v1779 = vmax.f32 %v1601, %v1690
    %1780 = vmax.xlane.f32.xlu0 %v1779
    %v1781 = vpop.xlane.xlu0 %1780
    %v1782 = vmax.f32 %v1604, %v1693
    %1783 = vmax.xlane.f32.xlu0 %v1782
    %v1784 = vpop.xlane.xlu0 %1783
    %v1785 = vmax.f32 %v1606, %v1695
    %1786 = vmax.xlane.f32.xlu0 %v1785
    %v1787 = vpop.xlane.xlu0 %1786
    %v1788 = vmax.f32 %v1609, %v1698
    %1789 = vmax.xlane.f32.xlu0 %v1788
    %v1790 = vpop.xlane.xlu0 %1789
    %v1791 = vmax.f32 %v1611, %v1700
    %1792 = vmax.xlane.f32.xlu0 %v1791
    %v1793 = vpop.xlane.xlu0 %1792
    %v1794 = vmax.f32 %v1614, %v1703
    %1795 = vmax.xlane.f32.xlu0 %v1794
    %v1796 = vpop.xlane.xlu0 %1795
    %v1797 = vmax.f32 %v1616, %v1705
    %1798 = vmax.xlane.f32.xlu0 %v1797
    %v1799 = vpop.xlane.xlu0 %1798
    %v1800 = vmax.f32 %v1619, %v1708
    %1801 = vmax.xlane.f32.xlu0 %v1800
    %v1802 = vpop.xlane.xlu0 %1801
    %v1803 = vmax.f32 %v1621, %v1710
    %1804 = vmax.xlane.f32.xlu0 %v1803
    %v1805 = vpop.xlane.xlu0 %1804
    %v1806 = vmax.f32 %v1624, %v1713
    %1807 = vmax.xlane.f32.xlu0 %v1806
    %v1808 = vpop.xlane.xlu0 %1807
    %v1809 = vmax.f32 %v1626, %v1715
    %1810 = vmax.xlane.f32.xlu0 %v1809
    %v1811 = vpop.xlane.xlu0 %1810
    %v1812 = vmax.f32 %v1629, %v1718
    %1813 = vmax.xlane.f32.xlu0 %v1812
    %v1814 = vpop.xlane.xlu0 %1813
    %v1815 = vmax.f32 %v1631, %v1720
    %1816 = vmax.xlane.f32.xlu0 %v1815
    %v1817 = vpop.xlane.xlu0 %1816
    %v1818 = vsub.f32 %v1554, %v1724
    %v1819 = vsub.f32 %v1643, %v1724
    %v1820 = vsub.f32 %v1556, %v1727
    %v1821 = vsub.f32 %v1645, %v1727
    %v1822 = vsub.f32 %v1559, %v1730
    %v1823 = vsub.f32 %v1648, %v1730
    %v1824 = vsub.f32 %v1561, %v1733
    %v1825 = vsub.f32 %v1650, %v1733
    %v1826 = vsub.f32 %v1564, %v1736
    %v1827 = vsub.f32 %v1653, %v1736
    %v1828 = vsub.f32 %v1566, %v1739
    %v1829 = vsub.f32 %v1655, %v1739
    %v1830 = vsub.f32 %v1569, %v1742
    %v1831 = vsub.f32 %v1658, %v1742
    %v1832 = vsub.f32 %v1571, %v1745
    %v1833 = vsub.f32 %v1660, %v1745
    %v1834 = vsub.f32 %v1574, %v1748
    %v1835 = vsub.f32 %v1663, %v1748
    %v1836 = vsub.f32 %v1576, %v1751
    %v1837 = vsub.f32 %v1665, %v1751
    %v1838 = vsub.f32 %v1579, %v1754
    %v1839 = vsub.f32 %v1668, %v1754
    %v1840 = vsub.f32 %v1581, %v1757
    %v1841 = vsub.f32 %v1670, %v1757
    %v1842 = vsub.f32 %v1584, %v1760
    %v1843 = vsub.f32 %v1673, %v1760
    %v1844 = vsub.f32 %v1586, %v1763
    %v1845 = vsub.f32 %v1675, %v1763
    %v1846 = vsub.f32 %v1589, %v1766
    %v1847 = vsub.f32 %v1678, %v1766
    %v1848 = vsub.f32 %v1591, %v1769
    %v1849 = vsub.f32 %v1680, %v1769
    %v1850 = vsub.f32 %v1594, %v1772
    %v1851 = vsub.f32 %v1683, %v1772
    %v1852 = vsub.f32 %v1596, %v1775
    %v1853 = vsub.f32 %v1685, %v1775
    %v1854 = vsub.f32 %v1599, %v1778
    %v1855 = vsub.f32 %v1688, %v1778
    %v1856 = vsub.f32 %v1601, %v1781
    %v1857 = vsub.f32 %v1690, %v1781
    %v1858 = vsub.f32 %v1604, %v1784
    %v1859 = vsub.f32 %v1693, %v1784
    %v1860 = vsub.f32 %v1606, %v1787
    %v1861 = vsub.f32 %v1695, %v1787
    %v1862 = vsub.f32 %v1609, %v1790
    %v1863 = vsub.f32 %v1698, %v1790
    %v1864 = vsub.f32 %v1611, %v1793
    %v1865 = vsub.f32 %v1700, %v1793
    %v1866 = vsub.f32 %v1614, %v1796
    %v1867 = vsub.f32 %v1703, %v1796
    %v1868 = vsub.f32 %v1616, %v1799
    %v1869 = vsub.f32 %v1705, %v1799
    %v1870 = vsub.f32 %v1619, %v1802
    %v1871 = vsub.f32 %v1708, %v1802
    %v1872 = vsub.f32 %v1621, %v1805
    %v1873 = vsub.f32 %v1710, %v1805
    %v1874 = vsub.f32 %v1624, %v1808
    %v1875 = vsub.f32 %v1713, %v1808
    %v1876 = vsub.f32 %v1626, %v1811
    %v1877 = vsub.f32 %v1715, %v1811
    %v1878 = vsub.f32 %v1629, %v1814
    %v1879 = vsub.f32 %v1718, %v1814
    %v1880 = vsub.f32 %v1631, %v1817
    %v1881 = vsub.f32 %v1720, %v1817
    %v1882 = vmul.f32 %v1818, 1.442695
    %v1883 = vpow.pop %v1882
    %v1884 = vmul.f32 %v1819, 1.442695
    %v1885 = vpow.pop %v1884
    %v1886 = vmul.f32 %v1820, 1.442695
    %v1887 = vpow.pop %v1886
    %v1888 = vmul.f32 %v1821, 1.442695
    %v1889 = vpow.pop %v1888
    %v1890 = vmul.f32 %v1822, 1.442695
    %v1891 = vpow.pop %v1890
    %v1892 = vmul.f32 %v1823, 1.442695
    %v1893 = vpow.pop %v1892
    %v1894 = vmul.f32 %v1824, 1.442695
    %v1895 = vpow.pop %v1894
    %v1896 = vmul.f32 %v1825, 1.442695
    %v1897 = vpow.pop %v1896
    %v1898 = vmul.f32 %v1826, 1.442695
    %v1899 = vpow.pop %v1898
    %v1900 = vmul.f32 %v1827, 1.442695
    %v1901 = vpow.pop %v1900
    %v1902 = vmul.f32 %v1828, 1.442695
    %v1903 = vpow.pop %v1902
    %v1904 = vmul.f32 %v1829, 1.442695
    %v1905 = vpow.pop %v1904
    %v1906 = vmul.f32 %v1830, 1.442695
    %v1907 = vpow.pop %v1906
    %v1908 = vmul.f32 %v1831, 1.442695
    %v1909 = vpow.pop %v1908
    %v1910 = vmul.f32 %v1832, 1.442695
    %v1911 = vpow.pop %v1910
    %v1912 = vmul.f32 %v1833, 1.442695
    %v1913 = vpow.pop %v1912
    %v1914 = vmul.f32 %v1834, 1.442695
    %v1915 = vpow.pop %v1914
    %v1916 = vmul.f32 %v1835, 1.442695
    %v1917 = vpow.pop %v1916
    %v1918 = vmul.f32 %v1836, 1.442695
    %v1919 = vpow.pop %v1918
    %v1920 = vmul.f32 %v1837, 1.442695
    %v1921 = vpow.pop %v1920
    %v1922 = vmul.f32 %v1838, 1.442695
    %v1923 = vpow.pop %v1922
    %v1924 = vmul.f32 %v1839, 1.442695
    %v1925 = vpow.pop %v1924
    %v1926 = vmul.f32 %v1840, 1.442695
    %v1927 = vpow.pop %v1926
    %v1928 = vmul.f32 %v1841, 1.442695
    %v1929 = vpow.pop %v1928
    %v1930 = vmul.f32 %v1842, 1.442695
    %v1931 = vpow.pop %v1930
    %v1932 = vmul.f32 %v1843, 1.442695
    %v1933 = vpow.pop %v1932
    %v1934 = vmul.f32 %v1844, 1.442695
    %v1935 = vpow.pop %v1934
    %v1936 = vmul.f32 %v1845, 1.442695
    %v1937 = vpow.pop %v1936
    %v1938 = vmul.f32 %v1846, 1.442695
    %v1939 = vpow.pop %v1938
    %v1940 = vmul.f32 %v1847, 1.442695
    %v1941 = vpow.pop %v1940
    %v1942 = vmul.f32 %v1848, 1.442695
    %v1943 = vpow.pop %v1942
    %v1944 = vmul.f32 %v1849, 1.442695
    %v1945 = vpow.pop %v1944
    %v1946 = vmul.f32 %v1850, 1.442695
    %v1947 = vpow.pop %v1946
    %v1948 = vmul.f32 %v1851, 1.442695
    %v1949 = vpow.pop %v1948
    %v1950 = vmul.f32 %v1852, 1.442695
    %v1951 = vpow.pop %v1950
    %v1952 = vmul.f32 %v1853, 1.442695
    %v1953 = vpow.pop %v1952
    %v1954 = vmul.f32 %v1854, 1.442695
    %v1955 = vpow.pop %v1954
    %v1956 = vmul.f32 %v1855, 1.442695
    %v1957 = vpow.pop %v1956
    %v1958 = vmul.f32 %v1856, 1.442695
    %v1959 = vpow.pop %v1958
    %v1960 = vmul.f32 %v1857, 1.442695
    %v1961 = vpow.pop %v1960
    %v1962 = vmul.f32 %v1858, 1.442695
    %v1963 = vpow.pop %v1962
    %v1964 = vmul.f32 %v1859, 1.442695
    %v1965 = vpow.pop %v1964
    %v1966 = vmul.f32 %v1860, 1.442695
    %v1967 = vpow.pop %v1966
    %v1968 = vmul.f32 %v1861, 1.442695
    %v1969 = vpow.pop %v1968
    %v1970 = vmul.f32 %v1862, 1.442695
    %v1971 = vpow.pop %v1970
    %v1972 = vmul.f32 %v1863, 1.442695
    %v1973 = vpow.pop %v1972
    %v1974 = vmul.f32 %v1864, 1.442695
    %v1975 = vpow.pop %v1974
    %v1976 = vmul.f32 %v1865, 1.442695
    %v1977 = vpow.pop %v1976
    %v1978 = vmul.f32 %v1866, 1.442695
    %v1979 = vpow.pop %v1978
    %v1980 = vmul.f32 %v1867, 1.442695
    %v1981 = vpow.pop %v1980
    %v1982 = vmul.f32 %v1868, 1.442695
    %v1983 = vpow.pop %v1982
    %v1984 = vmul.f32 %v1869, 1.442695
    %v1985 = vpow.pop %v1984
    %v1986 = vmul.f32 %v1870, 1.442695
    %v1987 = vpow.pop %v1986
    %v1988 = vmul.f32 %v1871, 1.442695
    %v1989 = vpow.pop %v1988
    %v1990 = vmul.f32 %v1872, 1.442695
    %v1991 = vpow.pop %v1990
    %v1992 = vmul.f32 %v1873, 1.442695
    %v1993 = vpow.pop %v1992
    %v1994 = vmul.f32 %v1874, 1.442695
    %v1995 = vpow.pop %v1994
    %v1996 = vmul.f32 %v1875, 1.442695
    %v1997 = vpow.pop %v1996
    %v1998 = vmul.f32 %v1876, 1.442695
    %v1999 = vpow.pop %v1998
    %v2000 = vmul.f32 %v1877, 1.442695
    %v2001 = vpow.pop %v2000
    %v2002 = vmul.f32 %v1878, 1.442695
    %v2003 = vpow.pop %v2002
    %v2004 = vmul.f32 %v1879, 1.442695
    %v2005 = vpow.pop %v2004
    %v2006 = vmul.f32 %v1880, 1.442695
    %v2007 = vpow.pop %v2006
    %v2008 = vmul.f32 %v1881, 1.442695
    %v2009 = vpow.pop %v2008
    %v2010 = vadd.f32 %v1883, %v1885
    %2011 = vadd.xlane.f32.xlu0 %v2010
    %v2012 = vpop.xlane.xlu0 %2011
    %v2013 = vadd.f32 %v1887, %v1889
    %2014 = vadd.xlane.f32.xlu0 %v2013
    %v2015 = vpop.xlane.xlu0 %2014
    %v2016 = vadd.f32 %v1891, %v1893
    %2017 = vadd.xlane.f32.xlu0 %v2016
    %v2018 = vpop.xlane.xlu0 %2017
    %v2019 = vadd.f32 %v1895, %v1897
    %2020 = vadd.xlane.f32.xlu0 %v2019
    %v2021 = vpop.xlane.xlu0 %2020
    %v2022 = vadd.f32 %v1899, %v1901
    %2023 = vadd.xlane.f32.xlu0 %v2022
    %v2024 = vpop.xlane.xlu0 %2023
    %v2025 = vadd.f32 %v1903, %v1905
    %2026 = vadd.xlane.f32.xlu0 %v2025
    %v2027 = vpop.xlane.xlu0 %2026
    %v2028 = vadd.f32 %v1907, %v1909
    %2029 = vadd.xlane.f32.xlu0 %v2028
    %v2030 = vpop.xlane.xlu0 %2029
    %v2031 = vadd.f32 %v1911, %v1913
    %2032 = vadd.xlane.f32.xlu0 %v2031
    %v2033 = vpop.xlane.xlu0 %2032
    %v2034 = vadd.f32 %v1915, %v1917
    %2035 = vadd.xlane.f32.xlu0 %v2034
    %v2036 = vpop.xlane.xlu0 %2035
    %v2037 = vadd.f32 %v1919, %v1921
    %2038 = vadd.xlane.f32.xlu0 %v2037
    %v2039 = vpop.xlane.xlu0 %2038
    %v2040 = vadd.f32 %v1923, %v1925
    %2041 = vadd.xlane.f32.xlu0 %v2040
    %v2042 = vpop.xlane.xlu0 %2041
    %v2043 = vadd.f32 %v1927, %v1929
    %2044 = vadd.xlane.f32.xlu0 %v2043
    %v2045 = vpop.xlane.xlu0 %2044
    %v2046 = vadd.f32 %v1931, %v1933
    %2047 = vadd.xlane.f32.xlu0 %v2046
    %v2048 = vpop.xlane.xlu0 %2047
    %v2049 = vadd.f32 %v1935, %v1937
    %2050 = vadd.xlane.f32.xlu0 %v2049
    %v2051 = vpop.xlane.xlu0 %2050
    %v2052 = vadd.f32 %v1939, %v1941
    %2053 = vadd.xlane.f32.xlu0 %v2052
    %v2054 = vpop.xlane.xlu0 %2053
    %v2055 = vadd.f32 %v1943, %v1945
    %2056 = vadd.xlane.f32.xlu0 %v2055
    %v2057 = vpop.xlane.xlu0 %2056
    %v2058 = vadd.f32 %v1947, %v1949
    %2059 = vadd.xlane.f32.xlu0 %v2058
    %v2060 = vpop.xlane.xlu0 %2059
    %v2061 = vadd.f32 %v1951, %v1953
    %2062 = vadd.xlane.f32.xlu0 %v2061
    %v2063 = vpop.xlane.xlu0 %2062
    %v2064 = vadd.f32 %v1955, %v1957
    %2065 = vadd.xlane.f32.xlu0 %v2064
    %v2066 = vpop.xlane.xlu0 %2065
    %v2067 = vadd.f32 %v1959, %v1961
    %2068 = vadd.xlane.f32.xlu0 %v2067
    %v2069 = vpop.xlane.xlu0 %2068
    %v2070 = vadd.f32 %v1963, %v1965
    %2071 = vadd.xlane.f32.xlu0 %v2070
    %v2072 = vpop.xlane.xlu0 %2071
    %v2073 = vadd.f32 %v1967, %v1969
    %2074 = vadd.xlane.f32.xlu0 %v2073
    %v2075 = vpop.xlane.xlu0 %2074
    %v2076 = vadd.f32 %v1971, %v1973
    %2077 = vadd.xlane.f32.xlu0 %v2076
    %v2078 = vpop.xlane.xlu0 %2077
    %v2079 = vadd.f32 %v1975, %v1977
    %2080 = vadd.xlane.f32.xlu0 %v2079
    %v2081 = vpop.xlane.xlu0 %2080
    %v2082 = vadd.f32 %v1979, %v1981
    %2083 = vadd.xlane.f32.xlu0 %v2082
    %v2084 = vpop.xlane.xlu0 %2083
    %v2085 = vadd.f32 %v1983, %v1985
    %2086 = vadd.xlane.f32.xlu0 %v2085
    %v2087 = vpop.xlane.xlu0 %2086
    %v2088 = vadd.f32 %v1987, %v1989
    %2089 = vadd.xlane.f32.xlu0 %v2088
    %v2090 = vpop.xlane.xlu0 %2089
    %v2091 = vadd.f32 %v1991, %v1993
    %2092 = vadd.xlane.f32.xlu0 %v2091
    %v2093 = vpop.xlane.xlu0 %2092
    %v2094 = vadd.f32 %v1995, %v1997
    %2095 = vadd.xlane.f32.xlu0 %v2094
    %v2096 = vpop.xlane.xlu0 %2095
    %v2097 = vadd.f32 %v1999, %v2001
    %2098 = vadd.xlane.f32.xlu0 %v2097
    %v2099 = vpop.xlane.xlu0 %2098
    %v2100 = vadd.f32 %v2003, %v2005
    %2101 = vadd.xlane.f32.xlu0 %v2100
    %v2102 = vpop.xlane.xlu0 %2101
    %v2103 = vadd.f32 %v2007, %v2009
    %2104 = vadd.xlane.f32.xlu0 %v2103
    %v2105 = vpop.xlane.xlu0 %2104
    %v2106 = vrcp.pop %v2012
    %v2107 = vrcp.pop %v2015
    %v2108 = vrcp.pop %v2018
    %v2109 = vrcp.pop %v2021
    %v2110 = vrcp.pop %v2024
    %v2111 = vrcp.pop %v2027
    %v2112 = vrcp.pop %v2030
    %v2113 = vrcp.pop %v2033
    %v2114 = vrcp.pop %v2036
    %v2115 = vrcp.pop %v2039
    %v2116 = vrcp.pop %v2042
    %v2117 = vrcp.pop %v2045
    %v2118 = vrcp.pop %v2048
    %v2119 = vrcp.pop %v2051
    %v2120 = vrcp.pop %v2054
    %v2121 = vrcp.pop %v2057
    %v2122 = vrcp.pop %v2060
    %v2123 = vrcp.pop %v2063
    %v2124 = vrcp.pop %v2066
    %v2125 = vrcp.pop %v2069
    %v2126 = vrcp.pop %v2072
    %v2127 = vrcp.pop %v2075
    %v2128 = vrcp.pop %v2078
    %v2129 = vrcp.pop %v2081
    %v2130 = vrcp.pop %v2084
    %v2131 = vrcp.pop %v2087
    %v2132 = vrcp.pop %v2090
    %v2133 = vrcp.pop %v2093
    %v2134 = vrcp.pop %v2096
    %v2135 = vrcp.pop %v2099
    %v2136 = vrcp.pop %v2102
    %v2137 = vrcp.pop %v2105
    %v2138 = vmul.f32 %v1883, %v2106
    %v2139 = vmul.f32 %v1885, %v2106
    %v2140 = vmul.f32 %v1887, %v2107
    %v2141 = vmul.f32 %v1889, %v2107
    %v2142 = vmul.f32 %v1891, %v2108
    %v2143 = vmul.f32 %v1893, %v2108
    %v2144 = vmul.f32 %v1895, %v2109
    %v2145 = vmul.f32 %v1897, %v2109
    %v2146 = vmul.f32 %v1899, %v2110
    %v2147 = vmul.f32 %v1901, %v2110
    %v2148 = vmul.f32 %v1903, %v2111
    %v2149 = vmul.f32 %v1905, %v2111
    %v2150 = vmul.f32 %v1907, %v2112
    %v2151 = vmul.f32 %v1909, %v2112
    %v2152 = vmul.f32 %v1911, %v2113
    %v2153 = vmul.f32 %v1913, %v2113
    %v2154 = vmul.f32 %v1915, %v2114
    %v2155 = vmul.f32 %v1917, %v2114
    %v2156 = vmul.f32 %v1919, %v2115
    %v2157 = vmul.f32 %v1921, %v2115
    %v2158 = vmul.f32 %v1923, %v2116
    %v2159 = vmul.f32 %v1925, %v2116
    %v2160 = vmul.f32 %v1927, %v2117
    %v2161 = vmul.f32 %v1929, %v2117
    %v2162 = vmul.f32 %v1931, %v2118
    %v2163 = vmul.f32 %v1933, %v2118
    %v2164 = vmul.f32 %v1935, %v2119
    %v2165 = vmul.f32 %v1937, %v2119
    %v2166 = vmul.f32 %v1939, %v2120
    %v2167 = vmul.f32 %v1941, %v2120
    %v2168 = vmul.f32 %v1943, %v2121
    %v2169 = vmul.f32 %v1945, %v2121
    %v2170 = vmul.f32 %v1947, %v2122
    %v2171 = vmul.f32 %v1949, %v2122
    %v2172 = vmul.f32 %v1951, %v2123
    %v2173 = vmul.f32 %v1953, %v2123
    %v2174 = vmul.f32 %v1955, %v2124
    %v2175 = vmul.f32 %v1957, %v2124
    %v2176 = vmul.f32 %v1959, %v2125
    %v2177 = vmul.f32 %v1961, %v2125
    %v2178 = vmul.f32 %v1963, %v2126
    %v2179 = vmul.f32 %v1965, %v2126
    %v2180 = vmul.f32 %v1967, %v2127
    %v2181 = vmul.f32 %v1969, %v2127
    %v2182 = vmul.f32 %v1971, %v2128
    %v2183 = vmul.f32 %v1973, %v2128
    %v2184 = vmul.f32 %v1975, %v2129
    %v2185 = vmul.f32 %v1977, %v2129
    %v2186 = vmul.f32 %v1979, %v2130
    %v2187 = vmul.f32 %v1981, %v2130
    %v2188 = vmul.f32 %v1983, %v2131
    %v2189 = vmul.f32 %v1985, %v2131
    %v2190 = vmul.f32 %v1987, %v2132
    %v2191 = vmul.f32 %v1989, %v2132
    %v2192 = vmul.f32 %v1991, %v2133
    %v2193 = vmul.f32 %v1993, %v2133
    %v2194 = vmul.f32 %v1995, %v2134
    %v2195 = vmul.f32 %v1997, %v2134
    %v2196 = vmul.f32 %v1999, %v2135
    %v2197 = vmul.f32 %v2001, %v2135
    %v2198 = vmul.f32 %v2003, %v2136
    %v2199 = vmul.f32 %v2005, %v2136
    %v2200 = vmul.f32 %v2007, %v2137
    %v2201 = vmul.f32 %v2009, %v2137
    %v2202 = vpack.c.bf16 %v2140, %v2138
    %v2203 = vpack.c.bf16 %v2141, %v2139
    %v2204 = vpack.c.bf16 %v2144, %v2142
    %v2205 = vpack.c.bf16 %v2145, %v2143
    %v2206 = vpack.c.bf16 %v2148, %v2146
    %v2207 = vpack.c.bf16 %v2149, %v2147
    %v2208 = vpack.c.bf16 %v2152, %v2150
    %v2209 = vpack.c.bf16 %v2153, %v2151
    %v2210 = vpack.c.bf16 %v2156, %v2154
    %v2211 = vpack.c.bf16 %v2157, %v2155
    %v2212 = vpack.c.bf16 %v2160, %v2158
    %v2213 = vpack.c.bf16 %v2161, %v2159
    %v2214 = vpack.c.bf16 %v2164, %v2162
    %v2215 = vpack.c.bf16 %v2165, %v2163
    %v2216 = vpack.c.bf16 %v2168, %v2166
    %v2217 = vpack.c.bf16 %v2169, %v2167
    %v2218 = vpack.c.bf16 %v2172, %v2170
    %v2219 = vpack.c.bf16 %v2173, %v2171
    %v2220 = vpack.c.bf16 %v2176, %v2174
    %v2221 = vpack.c.bf16 %v2177, %v2175
    %v2222 = vpack.c.bf16 %v2180, %v2178
    %v2223 = vpack.c.bf16 %v2181, %v2179
    %v2224 = vpack.c.bf16 %v2184, %v2182
    %v2225 = vpack.c.bf16 %v2185, %v2183
    %v2226 = vpack.c.bf16 %v2188, %v2186
    %v2227 = vpack.c.bf16 %v2189, %v2187
    %v2228 = vpack.c.bf16 %v2192, %v2190
    %v2229 = vpack.c.bf16 %v2193, %v2191
    %v2230 = vpack.c.bf16 %v2196, %v2194
    %v2231 = vpack.c.bf16 %v2197, %v2195
    %v2232 = vpack.c.bf16 %v2200, %v2198
    %v2233 = vpack.c.bf16 %v2201, %v2199
    %v2234 = vpack.c.bf16 %v1432, %v1430
    %v2235 = vpack.c.bf16 %v1461, %v1459
    %v2236 = vpack.c.bf16 %v1437, %v1435
    %v2237 = vpack.c.bf16 %v1466, %v1464
    %2238 = vmatpush.bf16.xpose.msra.mxu0 %v2216
    %2239 = vmatpush.bf16.xpose.msra.mxu0 %v2214
    %2240 = vmatpush.bf16.xpose.msra.mxu0 %v2212
    %2241 = vmatpush.bf16.xpose.msra.mxu0 %v2210
    %2242 = vmatpush.bf16.xpose.msra.mxu0 %v2208
    %2243 = vmatpush.bf16.xpose.msra.mxu0 %v2206
    %2244 = vmatpush.bf16.xpose.msra.mxu0 %v2204
    %2245 = vmatpush.bf16.xpose.msra.mxu0 %v2202
    %2246 = vmatmul.bf16.gmra.mxu0 %v2234
    %v2247 = vpop.f32.mrf.mxu0
    %v2248 = vadd.f32 0.0, %v2247
    %v2249 = vpop.f32.mrf.mxu0
    %v2250 = vadd.f32 0.0, %v2249
    %2251 = vmatmul.bf16.gmra.mxu0 %v2236
    %v2252 = vpop.f32.mrf.mxu0
    %v2253 = vadd.f32 0.0, %v2252
    %v2254 = vpop.f32.mrf.mxu0
    %v2255 = vadd.f32 0.0, %v2254
    %2256 = vdwg.mxu0
    %2257 = vmatpush.bf16.xpose.msra.mxu0 %v2217
    %2258 = vmatpush.bf16.xpose.msra.mxu0 %v2215
    %2259 = vmatpush.bf16.xpose.msra.mxu0 %v2213
    %2260 = vmatpush.bf16.xpose.msra.mxu0 %v2211
    %2261 = vmatpush.bf16.xpose.msra.mxu0 %v2209
    %2262 = vmatpush.bf16.xpose.msra.mxu0 %v2207
    %2263 = vmatpush.bf16.xpose.msra.mxu0 %v2205
    %2264 = vmatpush.bf16.xpose.msra.mxu0 %v2203
    %2265 = vmatmul.bf16.gmra.mxu0 %v2235
    %v2266 = vpop.f32.mrf.mxu0
    %v2267 = vadd.f32 %v2248, %v2266
    %v2268 = vpop.f32.mrf.mxu0
    %v2269 = vadd.f32 %v2250, %v2268
    %2270 = vmatmul.bf16.gmra.mxu0 %v2237
    %v2271 = vpop.f32.mrf.mxu0
    %v2272 = vadd.f32 %v2253, %v2271
    %v2273 = vpop.f32.mrf.mxu0
    %v2274 = vadd.f32 %v2255, %v2273
    %2275 = vdwg.mxu0
    %2276 = vmatpush.bf16.xpose.msra.mxu0 %v2232
    %2277 = vmatpush.bf16.xpose.msra.mxu0 %v2230
    %2278 = vmatpush.bf16.xpose.msra.mxu0 %v2228
    %2279 = vmatpush.bf16.xpose.msra.mxu0 %v2226
    %2280 = vmatpush.bf16.xpose.msra.mxu0 %v2224
    %2281 = vmatpush.bf16.xpose.msra.mxu0 %v2222
    %2282 = vmatpush.bf16.xpose.msra.mxu0 %v2220
    %2283 = vmatpush.bf16.xpose.msra.mxu0 %v2218
    %2284 = vmatmul.bf16.gmra.mxu0 %v2234
    %v2285 = vpop.f32.mrf.mxu0
    %v2286 = vadd.f32 0.0, %v2285
    %v2287 = vpop.f32.mrf.mxu0
    %v2288 = vadd.f32 0.0, %v2287
    %2289 = vmatmul.bf16.gmra.mxu0 %v2236
    %v2290 = vpop.f32.mrf.mxu0
    %v2291 = vadd.f32 0.0, %v2290
    %v2292 = vpop.f32.mrf.mxu0
    %v2293 = vadd.f32 0.0, %v2292
    %2294 = vdwg.mxu0
    %2295 = vmatpush.bf16.xpose.msra.mxu0 %v2233
    %2296 = vmatpush.bf16.xpose.msra.mxu0 %v2231
    %2297 = vmatpush.bf16.xpose.msra.mxu0 %v2229
    %2298 = vmatpush.bf16.xpose.msra.mxu0 %v2227
    %2299 = vmatpush.bf16.xpose.msra.mxu0 %v2225
    %2300 = vmatpush.bf16.xpose.msra.mxu0 %v2223
    %2301 = vmatpush.bf16.xpose.msra.mxu0 %v2221
    %2302 = vmatpush.bf16.xpose.msra.mxu0 %v2219
    %2303 = vmatmul.bf16.gmra.mxu0 %v2235
    %v2304 = vpop.f32.mrf.mxu0
    %v2305 = vadd.f32 %v2286, %v2304
    %v2306 = vpop.f32.mrf.mxu0
    %v2307 = vadd.f32 %v2288, %v2306
    %2308 = vmatmul.bf16.gmra.mxu0 %v2237
    %v2309 = vpop.f32.mrf.mxu0
    %v2310 = vadd.f32 %v2291, %v2309
    %v2311 = vpop.f32.mrf.mxu0
    %v2312 = vadd.f32 %v2293, %v2311
    %2313 = vdwg.mxu0
    %v2314 = vmax.f32 %v2267, 0.0
    %v2315 = vmax.f32 %v2305, 0.0
    %v2316 = vmax.f32 %v2269, 0.0
    %v2317 = vmax.f32 %v2307, 0.0
    %v2318 = vmax.f32 %v2272, 0.0
    %v2319 = vmax.f32 %v2310, 0.0
    %v2320 = vmax.f32 %v2274, 0.0
    %v2321 = vmax.f32 %v2312, 0.0
    %v2322 = vmax.f32 %v1323, 0.0
    %v2323 = vmax.f32 %v1324, 0.0
    %v2324 = vmax.f32 %v1325, 0.0
    %v2325 = vmax.f32 %v1326, 0.0
    %v2326 = vmax.f32 %v1327, 0.0
    %v2327 = vmax.f32 %v1328, 0.0
    %v2328 = vmax.f32 %v1329, 0.0
    %v2329 = vmax.f32 %v1330, 0.0
    %v2330 = vpack.c.bf16 %v2316, %v2314
    %v2331 = vpack.c.bf16 %v2317, %v2315
    %v2332 = vpack.c.bf16 %v2320, %v2318
    %v2333 = vpack.c.bf16 %v2321, %v2319
    %v2334 = vpack.c.bf16 %v2324, %v2322
    %v2335 = vpack.c.bf16 %v2325, %v2323
    %v2336 = vpack.c.bf16 %v2328, %v2326
    %v2337 = vpack.c.bf16 %v2329, %v2327
    %2338 = vmatpush.bf16.msra.mxu0 0
    %2339 = vmatpush.bf16.msra.mxu0 0
    %2340 = vmatpush.bf16.msra.mxu0 0
    %2341 = vmatpush.bf16.msra.mxu0 0
    %2342 = vmatpush.bf16.msra.mxu0 %v2336
    %2343 = vmatpush.bf16.msra.mxu0 %v2334
    %2344 = vmatpush.bf16.msra.mxu0 %v2332
    %2345 = vmatpush.bf16.msra.mxu0 %v2330
    %2346 = vmatmul.bf16.gmra.mxu0 %v1229
    %v2347 = vpop.f32.mrf.mxu0
    %v2348 = vadd.f32 %v1170, %v2347
    %v2349 = vpop.f32.mrf.mxu0
    %v2350 = vadd.f32 %v1175, %v2349
    %2351 = vmatmul.bf16.gmra.mxu0 %v1232
    %v2352 = vpop.f32.mrf.mxu0
    %v2353 = vadd.f32 %v1180, %v2352
    %v2354 = vpop.f32.mrf.mxu0
    %v2355 = vadd.f32 %v1185, %v2354
    %2356 = vmatmul.bf16.gmra.mxu0 %v1235
    %v2357 = vpop.f32.mrf.mxu0
    %v2358 = vadd.f32 %v1190, %v2357
    %v2359 = vpop.f32.mrf.mxu0
    %v2360 = vadd.f32 %v1195, %v2359
    %2361 = vmatmul.bf16.gmra.mxu0 %v1238
    %v2362 = vpop.f32.mrf.mxu0
    %v2363 = vadd.f32 %v1200, %v2362
    %v2364 = vpop.f32.mrf.mxu0
    %v2365 = vadd.f32 %v1205, %v2364
    %2366 = vdwg.mxu0
    %2367 = vmatpush.bf16.msra.mxu0 0
    %2368 = vmatpush.bf16.msra.mxu0 0
    %2369 = vmatpush.bf16.msra.mxu0 0
    %2370 = vmatpush.bf16.msra.mxu0 0
    %2371 = vmatpush.bf16.msra.mxu0 %v2337
    %2372 = vmatpush.bf16.msra.mxu0 %v2335
    %2373 = vmatpush.bf16.msra.mxu0 %v2333
    %2374 = vmatpush.bf16.msra.mxu0 %v2331
    %2375 = vmatmul.bf16.gmra.mxu0 %v1229
    %v2376 = vpop.f32.mrf.mxu0
    %v2377 = vadd.f32 %v1170, %v2376
    %v2378 = vpop.f32.mrf.mxu0
    %v2379 = vadd.f32 %v1175, %v2378
    %2380 = vmatmul.bf16.gmra.mxu0 %v1232
    %v2381 = vpop.f32.mrf.mxu0
    %v2382 = vadd.f32 %v1180, %v2381
    %v2383 = vpop.f32.mrf.mxu0
    %v2384 = vadd.f32 %v1185, %v2383
    %2385 = vmatmul.bf16.gmra.mxu0 %v1235
    %v2386 = vpop.f32.mrf.mxu0
    %v2387 = vadd.f32 %v1190, %v2386
    %v2388 = vpop.f32.mrf.mxu0
    %v2389 = vadd.f32 %v1195, %v2388
    %2390 = vmatmul.bf16.gmra.mxu0 %v1238
    %v2391 = vpop.f32.mrf.mxu0
    %v2392 = vadd.f32 %v1200, %v2391
    %v2393 = vpop.f32.mrf.mxu0
    %v2394 = vadd.f32 %v1205, %v2393
    %2395 = vdwg.mxu0
    %s2396 = scalar_lea.vmem [#allocation5], 128
    %2397 = vst [vmem:[%s2396] sm:$0xff] %v2348
    %2398 = vst [vmem:[%s2396 + $0x8] sm:$0xff] %v2377
    %2399 = vst [vmem:[%s2396 + $0x10] sm:$0xff] %v2350
    %2400 = vst [vmem:[%s2396 + $0x18] sm:$0xff] %v2379
    %2401 = vst [vmem:[%s2396 + $0x20] sm:$0xff] %v2353
    %2402 = vst [vmem:[%s2396 + $0x28] sm:$0xff] %v2382
    %2403 = vst [vmem:[%s2396 + $0x30] sm:$0xff] %v2355
    %2404 = vst [vmem:[%s2396 + $0x38] sm:$0xff] %v2384
    %2405 = vst [vmem:[%s2396 + $0x40] sm:$0xff] %v2358
    %2406 = vst [vmem:[%s2396 + $0x48] sm:$0xff] %v2387
    %2407 = vst [vmem:[%s2396 + $0x50] sm:$0xff] %v2360
    %2408 = vst [vmem:[%s2396 + $0x58] sm:$0xff] %v2389
    %2409 = vst [vmem:[%s2396 + $0x60] sm:$0xff] %v2363
    %2410 = vst [vmem:[%s2396 + $0x68] sm:$0xff] %v2392
    %2411 = vst [vmem:[%s2396 + $0x70] sm:$0xff] %v2365
    %2412 = vst [vmem:[%s2396 + $0x78] sm:$0xff] %v2394
    // Predicated region
    $region26: #{tpu_custom_call.1} parent=1 // pred_check
      _
    $region27: #{tpu_custom_call.1} parent=1 // pred_check_branch
      %2414 = sbr.rel (0) target = $region29
    $region28: #{tpu_custom_call.1} parent=1 // pred_region
      %2416 = vsyncadd [#allocation4], 0
      %s2417 = sshll.u32 [#allocation5], 4
      %s2418 = int_to_ptr.vmem [resolvable:$true] %s2417
      %s2419 = sshll.u32 %s5, 4
      %s2420 = int_to_ptr.hbm [resolvable:$true] %s2419
      %2425 = dma.vmem_to_hbm [thread:$0]  %s2418, 4096, %s2420, [#allocation4], 256, 256, 16
    $region29: #{tpu_custom_call.1} parent=1 // pred_fallthru
      _
    // Predicated region
    $region30: #{tpu_custom_call.1} parent=1 // pred_check
      _
    $region31: #{tpu_custom_call.1} parent=1 // pred_check_branch
      %2427 = sbr.rel (0) target = $region33
    $region32: #{tpu_custom_call.1} parent=1 // pred_region
      %2429 = dma.done [#allocation4], 4096
    $region33: #{tpu_custom_call.1} parent=1 // pred_fallthru
      _
    %2430 = vsyncpa [#allocation3], 1
    %2431 = vsyncpa [#allocation4], 1

</llo_original>
